<compile_context>
chip_gen: v5e
topology: v5e:2x2
jax: 0.10.0
libtpu: 0.0.40
codegen_flags: <defaults>
</compile_context>

<pallas_src>
import math
import functools

import jax
import jax.numpy as jnp
from jax.experimental import pallas as pl
from jax.experimental.pallas import tpu as pltpu


def _ln(x, g, b, eps=1e-5):
    """PyTorch-style LayerNorm over the last axis (biased variance)."""
    mu = jnp.mean(x, axis=-1, keepdims=True)
    var = jnp.mean((x - mu) ** 2, axis=-1, keepdims=True)
    return (x - mu) * jax.lax.rsqrt(var + eps) * g + b


# ---------------------------------------------------------------------------
# Single fused kernel: one batch *block* per grid step, everything in VMEM.
# ---------------------------------------------------------------------------
def fused_video_encoder_kernel(x_ref, m_ref,
                               ln1_ref, win_ref, pos_ref, vec_ref,
                               wqkv_ref, bqkv_ref, wo_ref,
                               o_ref, *, num_heads, n_layers, bpb):
    L = x_ref.shape[1]
    Dv = x_ref.shape[2]
    H = win_ref.shape[1]
    hd = H // num_heads

    # ---- packed small params (static slices on VMEM refs are free) ----------
    ln1_g = ln1_ref[0:1, :]
    ln1_b = ln1_ref[1:2, :]
    b_in = vec_ref[0:1, :]
    lnp_g = vec_ref[1:2, :]
    lnp_b = vec_ref[2:3, :]
    bo = vec_ref[3:4, :]
    ln_g = vec_ref[4:5, :]
    ln_b = vec_ref[5:6, :]
    w_in = win_ref[...]                      # (Dv, H)
    pos = pos_ref[...]                       # (L, H)
    wqkv = wqkv_ref[...]                     # (H, 3H)  (Q cols pre-scaled by 1/sqrt(hd))
    bqkv = bqkv_ref[...]                     # (1, 3H)
    wo = wo_ref[...]                         # (H, H)

    # ---- Stage 1: LinearLayer = LayerNorm -> Linear -> ReLU -----------------
    # Fold (bpb, L) into the matmul M dimension.
    x = x_ref[...].reshape(bpb * L, Dv)
    xn = _ln(x, ln1_g, ln1_b)
    feat = jnp.dot(xn, w_in, preferred_element_type=jnp.float32) + b_in
    feat = jnp.maximum(feat, 0.0)            # (bpb*L, H)

    # ---- Stage 2: positional embedding + LayerNorm ---------------------------
    pos_full = pos if bpb == 1 else jnp.concatenate([pos] * bpb, axis=0)
    feat = _ln(feat + pos_full, lnp_g, lnp_b)

    # additive mask term, computed once per block (outside the layer loop)
    neg = (1.0 - m_ref[...]) * -10000.0      # (bpb, 1, L)

    # ---- Stage 3: BertAttention layers (shared weights) ----------------------
    def layer_step(f):
        # fused QKV projection over the folded M dim: (bpb*L, H) @ (H, 3H)
        qkv = jnp.dot(f, wqkv, preferred_element_type=jnp.float32) + bqkv
        q = qkv[:, :H]
        k = qkv[:, H:2 * H]
        v = qkv[:, 2 * H:]
        ctx_rows = []
        for b in range(bpb):                           # static, tiny trip count
            rb = slice(b * L, (b + 1) * L)
            qb, kb, vb = q[rb], k[rb], v[rb]           # (L, H) each
            nb = neg[b]                                # (1, L)
            heads = []
            for h in range(num_heads):                 # static, tiny trip count
                cs = slice(h * hd, (h + 1) * hd)
                # scores: q_h @ k_h^T (scale already folded into wqkv/bqkv)
                s = jax.lax.dot_general(
                    qb[:, cs], kb[:, cs],
                    dimension_numbers=(((1,), (1,)), ((), ())),
                    preferred_element_type=jnp.float32) + nb
                s = s - jnp.max(s, axis=-1, keepdims=True)
                p = jnp.exp(s)
                # exact reciprocal keeps us within 1e-4 of the f32 reference;
                # use approx=True (EUP slot) at production scale.
                p = p * pl.reciprocal(jnp.sum(p, axis=-1, keepdims=True),
                                      approx=False)
                heads.append(jnp.dot(p, vb[:, cs],
                                     preferred_element_type=jnp.float32))
            ctx_rows.append(jnp.concatenate(heads, axis=-1))       # (L, H)
        ctx = ctx_rows[0] if bpb == 1 else jnp.concatenate(ctx_rows, axis=0)
        # output projection: single (bpb*L,H)@(H,H) matmul — head reduction is
        # folded into the contraction.
        out = jnp.dot(ctx, wo, preferred_element_type=jnp.float32) + bo + f
        return _ln(out, ln_g, ln_b)

    for _ in range(n_layers):                # static unroll (n_layers is small)
        feat = layer_step(feat)

    # ---- Stage 4: mean pool over the sequence (fused epilogue) ---------------
    inv_l = 1.0 / L
    for b in range(bpb):
        o_ref[b] = jnp.sum(feat[b * L:(b + 1) * L], axis=0, keepdims=True) * inv_l


def video_transformer_encoding_pallas(videos, videos_mask, params, num_heads,
                                      n_layers, *, batch_blocks=None):
    B, L, Dv = videos.shape
    H = params["w_in"].shape[1]
    hd = H // num_heads
    lp = params["layer"]

    # Very few grid steps: 2 (keeps both v7x TensorCores busy) when the batch
    # splits evenly, otherwise 1.  On v5e/v6e the second step is just a cheap
    # serial iteration.
    if batch_blocks is None:
        batch_blocks = 2 if (B % 2 == 0 and B >= 2) else 1
    bpb = B // batch_blocks

    # ---- one-time host-side weight packing -----------------------------------
    scale = 1.0 / math.sqrt(hd)
    col_scale = jnp.concatenate(
        [jnp.full((H,), scale, jnp.float32), jnp.ones((2 * H,), jnp.float32)]
    )[None, :]                                          # (1, 3H)
    wqkv = lp["wqkv"] * col_scale                       # fold 1/sqrt(hd) into Q
    bqkv = lp["bqkv"] * col_scale

    ln1_pack = jnp.concatenate([params["ln1_g"], params["ln1_b"]], axis=0)   # (2, Dv)
    vec_pack = jnp.concatenate([params["b_in"], params["lnp_g"], params["lnp_b"],
                                lp["bo"], lp["ln_g"], lp["ln_b"]], axis=0)    # (6, H)
    mask3 = videos_mask[:, None, :]                     # (B, 1, L)

    kern = functools.partial(fused_video_encoder_kernel,
                             num_heads=num_heads, n_layers=n_layers, bpb=bpb)
    out = pl.pallas_call(
        kern,
        out_shape=jax.ShapeDtypeStruct((B, 1, H), jnp.float32),
        grid=(batch_blocks,),
        in_specs=[
            pl.BlockSpec((bpb, L, Dv), lambda i: (i, 0, 0)),    # videos
            pl.BlockSpec((bpb, 1, L), lambda i: (i, 0, 0)),     # mask
            pl.BlockSpec((2, Dv), lambda i: (0, 0)),            # ln1 gamma/beta
            pl.BlockSpec((Dv, H), lambda i: (0, 0)),            # w_in
            pl.BlockSpec((L, H), lambda i: (0, 0)),             # pos embedding
            pl.BlockSpec((6, H), lambda i: (0, 0)),             # packed H-vectors
            pl.BlockSpec((H, 3 * H), lambda i: (0, 0)),         # wqkv
            pl.BlockSpec((1, 3 * H), lambda i: (0, 0)),         # bqkv
            pl.BlockSpec((H, H), lambda i: (0, 0)),             # wo
        ],
        out_specs=pl.BlockSpec((bpb, 1, H), lambda i: (i, 0, 0)),
        compiler_params=pltpu.CompilerParams(dimension_semantics=("parallel",)),
    )(videos, mask3, ln1_pack, params["w_in"], params["pos"], vec_pack,
      wqkv, bqkv, lp["wo"])
    return out[:, 0, :]                                 # (B, H)


# ---------------------------------------------------------------------------
# Pure-JAX reference (mirrors the PyTorch module, eval mode)
# ---------------------------------------------------------------------------
def video_transformer_encoding_ref(videos, videos_mask, params, num_heads, n_layers):
    B, L, _ = videos.shape
    feat = _ln(videos, params["ln1_g"][0], params["ln1_b"][0])
    feat = jnp.maximum(jnp.einsum("bld,dh->blh", feat, params["w_in"]) + params["b_in"][0], 0.0)
    feat = _ln(feat + params["pos"][None], params["lnp_g"][0], params["lnp_b"][0])
    H = feat.shape[-1]
    hd = H // num_heads
    neg = (1.0 - videos_mask)[:, None, None, :] * -10000.0     # (B,1,1,L)
    lp = params["layer"]
    for _ in range(n_layers):
        qkv = jnp.einsum("blh,hk->blk", feat, lp["wqkv"]) + lp["bqkv"][0]
        q, k, v = qkv[..., :H], qkv[..., H:2 * H], qkv[..., 2 * H:]
        qh = q.reshape(B, L, num_heads, hd).transpose(0, 2, 1, 3)
        kh = k.reshape(B, L, num_heads, hd).transpose(0, 2, 1, 3)
        vh = v.reshape(B, L, num_heads, hd).transpose(0, 2, 1, 3)
        s = jnp.einsum("bhqd,bhkd->bhqk", qh, kh) / math.sqrt(hd) + neg
        p = jax.nn.softmax(s, axis=-1)
        ctx = jnp.einsum("bhqk,bhkd->bhqd", p, vh).transpose(0, 2, 1, 3).reshape(B, L, H)
        out = jnp.einsum("blh,hk->blk", ctx, lp["wo"]) + lp["bo"][0]
        feat = _ln(out + feat, lp["ln_g"][0], lp["ln_b"][0])
    return jnp.mean(feat, axis=1)


if __name__ == "__main__":
    # "opt" hyper-params (small, consistent with the module)
    visual_feat_dim = 64      # opt.visual_feat_dim
    hidden_size = 32          # opt.video_hidden_size
    num_heads = 4             # opt.video_num_attention
    n_layers = 2              # opt.video_layer
    max_ctx_l = 80
    B, L = 2, 8

    key = jax.random.PRNGKey(0)
    ks = jax.random.split(key, 10)
    sc = 0.02

    params = {
        "ln1_g": jnp.ones((1, visual_feat_dim), jnp.float32),
        "ln1_b": jnp.zeros((1, visual_feat_dim), jnp.float32),
        "w_in": sc * jax.random.normal(ks[0], (visual_feat_dim, hidden_size), jnp.float32),
        "b_in": sc * jax.random.normal(ks[1], (1, hidden_size), jnp.float32),
        "pos": (sc * jax.random.normal(ks[2], (max_ctx_l, hidden_size), jnp.float32))[:L],
        "lnp_g": jnp.ones((1, hidden_size), jnp.float32),
        "lnp_b": jnp.zeros((1, hidden_size), jnp.float32),
        "layer": {
            "wqkv": sc * jax.random.normal(ks[3], (hidden_size, 3 * hidden_size), jnp.float32),
            "bqkv": sc * jax.random.normal(ks[4], (1, 3 * hidden_size), jnp.float32),
            "wo": sc * jax.random.normal(ks[5], (hidden_size, hidden_size), jnp.float32),
            "bo": sc * jax.random.normal(ks[6], (1, hidden_size), jnp.float32),
            "ln_g": jnp.ones((1, hidden_size), jnp.float32),
            "ln_b": jnp.zeros((1, hidden_size), jnp.float32),
        },
    }

    # inputs: (videos, videos_origin, lengths, videos_mask) -- only videos & mask are used
    videos = jax.random.normal(ks[7], (B, L, visual_feat_dim), jnp.float32)
    lengths = jnp.array([8, 5], jnp.int32)
    videos_mask = (jnp.arange(L)[None, :] < lengths[:, None]).astype(jnp.float32)  # (B, L)

    out = video_transformer_encoding_pallas(videos, videos_mask, params, num_heads, n_layers)
    out = jax.block_until_ready(out)

    ref = video_transformer_encoding_ref(videos, videos_mask, params, num_heads, n_layers)
    assert out.shape == (B, hidden_size)
    assert jnp.allclose(out, ref, atol=1e-4, rtol=1e-4), "mismatch vs. JAX reference"

    print("KERNEL_OK")
</pallas_src>

<mosaic_0001>
module attributes {stable_mosaic.version = 11 : i64} {
  func.func @fused_video_encoder_kernel(%arg0: i32, %arg1: memref<1x8x64xf32, #tpu.memory_space<vmem>>, %arg2: memref<1x1x8xf32, #tpu.memory_space<vmem>>, %arg3: memref<2x64xf32, #tpu.memory_space<vmem>>, %arg4: memref<64x32xf32, #tpu.memory_space<vmem>>, %arg5: memref<8x32xf32, #tpu.memory_space<vmem>>, %arg6: memref<6x32xf32, #tpu.memory_space<vmem>>, %arg7: memref<32x96xf32, #tpu.memory_space<vmem>>, %arg8: memref<1x96xf32, #tpu.memory_space<vmem>>, %arg9: memref<32x32xf32, #tpu.memory_space<vmem>>, %arg10: memref<1x1x32xf32, #tpu.memory_space<vmem>>) attributes {dimension_semantics = [#tpu.dimension_semantics<parallel>], iteration_bounds = array<i64: 2>, scalar_prefetch = 0 : i64, scratch_operands = 0 : i64, tpu.core_type = #tpu.core_type<tc>, window_params = [{transform_indices = @transform_0, window_bounds = array<i64: 1, 8, 64>}, {transform_indices = @transform_1, window_bounds = array<i64: 1, 1, 8>}, {pipeline_mode = #tpu.pipeline_mode<synchronous>, transform_indices = @transform_2, window_bounds = array<i64: 2, 64>}, {pipeline_mode = #tpu.pipeline_mode<synchronous>, transform_indices = @transform_3, window_bounds = array<i64: 64, 32>}, {pipeline_mode = #tpu.pipeline_mode<synchronous>, transform_indices = @transform_4, window_bounds = array<i64: 8, 32>}, {pipeline_mode = #tpu.pipeline_mode<synchronous>, transform_indices = @transform_5, window_bounds = array<i64: 6, 32>}, {pipeline_mode = #tpu.pipeline_mode<synchronous>, transform_indices = @transform_6, window_bounds = array<i64: 32, 96>}, {pipeline_mode = #tpu.pipeline_mode<synchronous>, transform_indices = @transform_7, window_bounds = array<i64: 1, 96>}, {pipeline_mode = #tpu.pipeline_mode<synchronous>, transform_indices = @transform_8, window_bounds = array<i64: 32, 32>}, {transform_indices = @transform_9, window_bounds = array<i64: 1, 1, 32>}]} {
    %c0 = arith.constant 0 : index
    %c0_0 = arith.constant 0 : index
    %0 = vector.load %arg3[%c0, %c0_0] : memref<2x64xf32, #tpu.memory_space<vmem>>, vector<1x64xf32>
    %c1 = arith.constant 1 : index
    %c0_1 = arith.constant 0 : index
    %1 = vector.load %arg3[%c1, %c0_1] : memref<2x64xf32, #tpu.memory_space<vmem>>, vector<1x64xf32>
    %c0_2 = arith.constant 0 : index
    %c0_3 = arith.constant 0 : index
    %2 = vector.load %arg6[%c0_2, %c0_3] : memref<6x32xf32, #tpu.memory_space<vmem>>, vector<1x32xf32>
    %c1_4 = arith.constant 1 : index
    %c0_5 = arith.constant 0 : index
    %3 = vector.load %arg6[%c1_4, %c0_5] : memref<6x32xf32, #tpu.memory_space<vmem>>, vector<1x32xf32>
    %c2 = arith.constant 2 : index
    %c0_6 = arith.constant 0 : index
    %4 = vector.load %arg6[%c2, %c0_6] : memref<6x32xf32, #tpu.memory_space<vmem>>, vector<1x32xf32>
    %c3 = arith.constant 3 : index
    %c0_7 = arith.constant 0 : index
    %5 = vector.load %arg6[%c3, %c0_7] : memref<6x32xf32, #tpu.memory_space<vmem>>, vector<1x32xf32>
    %c4 = arith.constant 4 : index
    %c0_8 = arith.constant 0 : index
    %6 = vector.load %arg6[%c4, %c0_8] : memref<6x32xf32, #tpu.memory_space<vmem>>, vector<1x32xf32>
    %c5 = arith.constant 5 : index
    %c0_9 = arith.constant 0 : index
    %7 = vector.load %arg6[%c5, %c0_9] : memref<6x32xf32, #tpu.memory_space<vmem>>, vector<1x32xf32>
    %c0_10 = arith.constant 0 : index
    %c0_11 = arith.constant 0 : index
    %8 = vector.load %arg4[%c0_10, %c0_11] : memref<64x32xf32, #tpu.memory_space<vmem>>, vector<64x32xf32>
    %c0_12 = arith.constant 0 : index
    %c0_13 = arith.constant 0 : index
    %9 = vector.load %arg5[%c0_12, %c0_13] : memref<8x32xf32, #tpu.memory_space<vmem>>, vector<8x32xf32>
    %c0_14 = arith.constant 0 : index
    %c0_15 = arith.constant 0 : index
    %10 = vector.load %arg7[%c0_14, %c0_15] : memref<32x96xf32, #tpu.memory_space<vmem>>, vector<32x96xf32>
    %c0_16 = arith.constant 0 : index
    %c0_17 = arith.constant 0 : index
    %11 = vector.load %arg8[%c0_16, %c0_17] : memref<1x96xf32, #tpu.memory_space<vmem>>, vector<1x96xf32>
    %c0_18 = arith.constant 0 : index
    %c0_19 = arith.constant 0 : index
    %12 = vector.load %arg9[%c0_18, %c0_19] : memref<32x32xf32, #tpu.memory_space<vmem>>, vector<32x32xf32>
    %c0_20 = arith.constant 0 : index
    %c0_21 = arith.constant 0 : index
    %c0_22 = arith.constant 0 : index
    %13 = vector.load %arg1[%c0_20, %c0_21, %c0_22] : memref<1x8x64xf32, #tpu.memory_space<vmem>>, vector<1x8x64xf32>
    %14 = vector.shape_cast %13 : vector<1x8x64xf32> to vector<8x64xf32>
    %cst = arith.constant dense<0.000000e+00> : vector<8xf32>
    %15 = vector.multi_reduction <add>, %14, %cst [1] : vector<8x64xf32> to vector<8xf32>
    %16 = vector.shape_cast %15 : vector<8xf32> to vector<8x1xf32>
    %cst_23 = arith.constant 6.400000e+01 : f32
    %17 = vector.broadcast %cst_23 : f32 to vector<8x1xf32>
    %18 = arith.divf %16, %17 : vector<8x1xf32>
    %19 = vector.broadcast %18 : vector<8x1xf32> to vector<8x64xf32>
    %20 = arith.subf %14, %19 : vector<8x64xf32>
    %21 = arith.mulf %20, %20 : vector<8x64xf32>
    %cst_24 = arith.constant dense<0.000000e+00> : vector<8xf32>
    %22 = vector.multi_reduction <add>, %21, %cst_24 [1] : vector<8x64xf32> to vector<8xf32>
    %23 = vector.shape_cast %22 : vector<8xf32> to vector<8x1xf32>
    %cst_25 = arith.constant 6.400000e+01 : f32
    %24 = vector.broadcast %cst_25 : f32 to vector<8x1xf32>
    %25 = arith.divf %23, %24 : vector<8x1xf32>
    %26 = vector.broadcast %18 : vector<8x1xf32> to vector<8x64xf32>
    %27 = arith.subf %14, %26 : vector<8x64xf32>
    %cst_26 = arith.constant 9.99999974E-6 : f32
    %28 = vector.broadcast %cst_26 : f32 to vector<8x1xf32>
    %29 = arith.addf %25, %28 : vector<8x1xf32>
    %30 = math.rsqrt %29 : vector<8x1xf32>
    %31 = vector.broadcast %30 : vector<8x1xf32> to vector<8x64xf32>
    %32 = arith.mulf %27, %31 : vector<8x64xf32>
    %33 = vector.broadcast %0 : vector<1x64xf32> to vector<8x64xf32>
    %34 = arith.mulf %32, %33 : vector<8x64xf32>
    %35 = vector.broadcast %1 : vector<1x64xf32> to vector<8x64xf32>
    %36 = arith.addf %34, %35 : vector<8x64xf32>
    %cst_27 = arith.constant dense<0.000000e+00> : vector<8x32xf32>
    %37 = tpu.matmul %36, %8, %cst_27 {dimension_numbers = #tpu.dot_dimension_numbers<[1], [0], [0], [1], [0, 0, 1, 1], [], []>} : vector<8x64xf32>, vector<64x32xf32>, vector<8x32xf32> -> vector<8x32xf32>
    %38 = vector.broadcast %2 : vector<1x32xf32> to vector<8x32xf32>
    %39 = arith.addf %37, %38 : vector<8x32xf32>
    %cst_28 = arith.constant 0.000000e+00 : f32
    %40 = vector.broadcast %cst_28 : f32 to vector<8x32xf32>
    %41 = arith.maximumf %39, %40 : vector<8x32xf32>
    %42 = arith.addf %41, %9 : vector<8x32xf32>
    %cst_29 = arith.constant dense<0.000000e+00> : vector<8xf32>
    %43 = vector.multi_reduction <add>, %42, %cst_29 [1] : vector<8x32xf32> to vector<8xf32>
    %44 = vector.shape_cast %43 : vector<8xf32> to vector<8x1xf32>
    %cst_30 = arith.constant 3.200000e+01 : f32
    %45 = vector.broadcast %cst_30 : f32 to vector<8x1xf32>
    %46 = arith.divf %44, %45 : vector<8x1xf32>
    %47 = vector.broadcast %46 : vector<8x1xf32> to vector<8x32xf32>
    %48 = arith.subf %42, %47 : vector<8x32xf32>
    %49 = arith.mulf %48, %48 : vector<8x32xf32>
    %cst_31 = arith.constant dense<0.000000e+00> : vector<8xf32>
    %50 = vector.multi_reduction <add>, %49, %cst_31 [1] : vector<8x32xf32> to vector<8xf32>
    %51 = vector.shape_cast %50 : vector<8xf32> to vector<8x1xf32>
    %cst_32 = arith.constant 3.200000e+01 : f32
    %52 = vector.broadcast %cst_32 : f32 to vector<8x1xf32>
    %53 = arith.divf %51, %52 : vector<8x1xf32>
    %54 = vector.broadcast %46 : vector<8x1xf32> to vector<8x32xf32>
    %55 = arith.subf %42, %54 : vector<8x32xf32>
    %cst_33 = arith.constant 9.99999974E-6 : f32
    %56 = vector.broadcast %cst_33 : f32 to vector<8x1xf32>
    %57 = arith.addf %53, %56 : vector<8x1xf32>
    %58 = math.rsqrt %57 : vector<8x1xf32>
    %59 = vector.broadcast %58 : vector<8x1xf32> to vector<8x32xf32>
    %60 = arith.mulf %55, %59 : vector<8x32xf32>
    %61 = vector.broadcast %3 : vector<1x32xf32> to vector<8x32xf32>
    %62 = arith.mulf %60, %61 : vector<8x32xf32>
    %63 = vector.broadcast %4 : vector<1x32xf32> to vector<8x32xf32>
    %64 = arith.addf %62, %63 : vector<8x32xf32>
    %c0_34 = arith.constant 0 : index
    %c0_35 = arith.constant 0 : index
    %c0_36 = arith.constant 0 : index
    %65 = vector.load %arg2[%c0_34, %c0_35, %c0_36] : memref<1x1x8xf32, #tpu.memory_space<vmem>>, vector<1x1x8xf32>
    %cst_37 = arith.constant 1.000000e+00 : f32
    %66 = vector.broadcast %cst_37 : f32 to vector<1x1x8xf32>
    %67 = arith.subf %66, %65 : vector<1x1x8xf32>
    %cst_38 = arith.constant -1.000000e+04 : f32
    %68 = vector.broadcast %cst_38 : f32 to vector<1x1x8xf32>
    %69 = arith.mulf %67, %68 : vector<1x1x8xf32>
    %cst_39 = arith.constant dense<0.000000e+00> : vector<8x96xf32>
    %70 = tpu.matmul %64, %10, %cst_39 {dimension_numbers = #tpu.dot_dimension_numbers<[1], [0], [0], [1], [0, 0, 1, 1], [], []>} : vector<8x32xf32>, vector<32x96xf32>, vector<8x96xf32> -> vector<8x96xf32>
    %71 = vector.broadcast %11 : vector<1x96xf32> to vector<8x96xf32>
    %72 = arith.addf %70, %71 : vector<8x96xf32>
    %73 = vector.extract_strided_slice %72 {offsets = [0, 0], sizes = [8, 32], strides = [1, 1]} : vector<8x96xf32> to vector<8x32xf32>
    %74 = vector.extract_strided_slice %72 {offsets = [0, 32], sizes = [8, 32], strides = [1, 1]} : vector<8x96xf32> to vector<8x32xf32>
    %75 = vector.extract_strided_slice %72 {offsets = [0, 64], sizes = [8, 32], strides = [1, 1]} : vector<8x96xf32> to vector<8x32xf32>
    %76 = vector.shape_cast %69 : vector<1x1x8xf32> to vector<1x8xf32>
    %77 = vector.extract_strided_slice %73 {offsets = [0, 0], sizes = [8, 8], strides = [1, 1]} : vector<8x32xf32> to vector<8x8xf32>
    %78 = vector.extract_strided_slice %74 {offsets = [0, 0], sizes = [8, 8], strides = [1, 1]} : vector<8x32xf32> to vector<8x8xf32>
    %cst_40 = arith.constant dense<0.000000e+00> : vector<8x8xf32>
    %79 = tpu.matmul %77, %78, %cst_40 {dimension_numbers = #tpu.dot_dimension_numbers<[1], [1], [0], [0], [0, 0, 1, 0], [], []>} : vector<8x8xf32>, vector<8x8xf32>, vector<8x8xf32> -> vector<8x8xf32>
    %80 = vector.broadcast %76 : vector<1x8xf32> to vector<8x8xf32>
    %81 = arith.addf %79, %80 : vector<8x8xf32>
    %cst_41 = arith.constant dense<0xFF800000> : vector<8xf32>
    %82 = vector.multi_reduction <maximumf>, %81, %cst_41 [1] : vector<8x8xf32> to vector<8xf32>
    %83 = vector.shape_cast %82 : vector<8xf32> to vector<8x1xf32>
    %84 = vector.broadcast %83 : vector<8x1xf32> to vector<8x8xf32>
    %85 = arith.subf %81, %84 : vector<8x8xf32>
    %86 = math.exp %85 : vector<8x8xf32>
    %cst_42 = arith.constant dense<0.000000e+00> : vector<8xf32>
    %87 = vector.multi_reduction <add>, %86, %cst_42 [1] : vector<8x8xf32> to vector<8xf32>
    %88 = vector.shape_cast %87 : vector<8xf32> to vector<8x1xf32>
    %89 = tpu.reciprocal %88 : vector<8x1xf32> -> vector<8x1xf32>
    %90 = vector.broadcast %89 : vector<8x1xf32> to vector<8x8xf32>
    %91 = arith.mulf %86, %90 : vector<8x8xf32>
    %92 = vector.extract_strided_slice %75 {offsets = [0, 0], sizes = [8, 8], strides = [1, 1]} : vector<8x32xf32> to vector<8x8xf32>
    %cst_43 = arith.constant dense<0.000000e+00> : vector<8x8xf32>
    %93 = tpu.matmul %91, %92, %cst_43 {dimension_numbers = #tpu.dot_dimension_numbers<[1], [0], [0], [1], [0, 0, 1, 1], [], []>} : vector<8x8xf32>, vector<8x8xf32>, vector<8x8xf32> -> vector<8x8xf32>
    %94 = vector.extract_strided_slice %73 {offsets = [0, 8], sizes = [8, 8], strides = [1, 1]} : vector<8x32xf32> to vector<8x8xf32>
    %95 = vector.extract_strided_slice %74 {offsets = [0, 8], sizes = [8, 8], strides = [1, 1]} : vector<8x32xf32> to vector<8x8xf32>
    %cst_44 = arith.constant dense<0.000000e+00> : vector<8x8xf32>
    %96 = tpu.matmul %94, %95, %cst_44 {dimension_numbers = #tpu.dot_dimension_numbers<[1], [1], [0], [0], [0, 0, 1, 0], [], []>} : vector<8x8xf32>, vector<8x8xf32>, vector<8x8xf32> -> vector<8x8xf32>
    %97 = vector.broadcast %76 : vector<1x8xf32> to vector<8x8xf32>
    %98 = arith.addf %96, %97 : vector<8x8xf32>
    %cst_45 = arith.constant dense<0xFF800000> : vector<8xf32>
    %99 = vector.multi_reduction <maximumf>, %98, %cst_45 [1] : vector<8x8xf32> to vector<8xf32>
    %100 = vector.shape_cast %99 : vector<8xf32> to vector<8x1xf32>
    %101 = vector.broadcast %100 : vector<8x1xf32> to vector<8x8xf32>
    %102 = arith.subf %98, %101 : vector<8x8xf32>
    %103 = math.exp %102 : vector<8x8xf32>
    %cst_46 = arith.constant dense<0.000000e+00> : vector<8xf32>
    %104 = vector.multi_reduction <add>, %103, %cst_46 [1] : vector<8x8xf32> to vector<8xf32>
    %105 = vector.shape_cast %104 : vector<8xf32> to vector<8x1xf32>
    %106 = tpu.reciprocal %105 : vector<8x1xf32> -> vector<8x1xf32>
    %107 = vector.broadcast %106 : vector<8x1xf32> to vector<8x8xf32>
    %108 = arith.mulf %103, %107 : vector<8x8xf32>
    %109 = vector.extract_strided_slice %75 {offsets = [0, 8], sizes = [8, 8], strides = [1, 1]} : vector<8x32xf32> to vector<8x8xf32>
    %cst_47 = arith.constant dense<0.000000e+00> : vector<8x8xf32>
    %110 = tpu.matmul %108, %109, %cst_47 {dimension_numbers = #tpu.dot_dimension_numbers<[1], [0], [0], [1], [0, 0, 1, 1], [], []>} : vector<8x8xf32>, vector<8x8xf32>, vector<8x8xf32> -> vector<8x8xf32>
    %111 = vector.extract_strided_slice %73 {offsets = [0, 16], sizes = [8, 8], strides = [1, 1]} : vector<8x32xf32> to vector<8x8xf32>
    %112 = vector.extract_strided_slice %74 {offsets = [0, 16], sizes = [8, 8], strides = [1, 1]} : vector<8x32xf32> to vector<8x8xf32>
    %cst_48 = arith.constant dense<0.000000e+00> : vector<8x8xf32>
    %113 = tpu.matmul %111, %112, %cst_48 {dimension_numbers = #tpu.dot_dimension_numbers<[1], [1], [0], [0], [0, 0, 1, 0], [], []>} : vector<8x8xf32>, vector<8x8xf32>, vector<8x8xf32> -> vector<8x8xf32>
    %114 = vector.broadcast %76 : vector<1x8xf32> to vector<8x8xf32>
    %115 = arith.addf %113, %114 : vector<8x8xf32>
    %cst_49 = arith.constant dense<0xFF800000> : vector<8xf32>
    %116 = vector.multi_reduction <maximumf>, %115, %cst_49 [1] : vector<8x8xf32> to vector<8xf32>
    %117 = vector.shape_cast %116 : vector<8xf32> to vector<8x1xf32>
    %118 = vector.broadcast %117 : vector<8x1xf32> to vector<8x8xf32>
    %119 = arith.subf %115, %118 : vector<8x8xf32>
    %120 = math.exp %119 : vector<8x8xf32>
    %cst_50 = arith.constant dense<0.000000e+00> : vector<8xf32>
    %121 = vector.multi_reduction <add>, %120, %cst_50 [1] : vector<8x8xf32> to vector<8xf32>
    %122 = vector.shape_cast %121 : vector<8xf32> to vector<8x1xf32>
    %123 = tpu.reciprocal %122 : vector<8x1xf32> -> vector<8x1xf32>
    %124 = vector.broadcast %123 : vector<8x1xf32> to vector<8x8xf32>
    %125 = arith.mulf %120, %124 : vector<8x8xf32>
    %126 = vector.extract_strided_slice %75 {offsets = [0, 16], sizes = [8, 8], strides = [1, 1]} : vector<8x32xf32> to vector<8x8xf32>
    %cst_51 = arith.constant dense<0.000000e+00> : vector<8x8xf32>
    %127 = tpu.matmul %125, %126, %cst_51 {dimension_numbers = #tpu.dot_dimension_numbers<[1], [0], [0], [1], [0, 0, 1, 1], [], []>} : vector<8x8xf32>, vector<8x8xf32>, vector<8x8xf32> -> vector<8x8xf32>
    %128 = vector.extract_strided_slice %73 {offsets = [0, 24], sizes = [8, 8], strides = [1, 1]} : vector<8x32xf32> to vector<8x8xf32>
    %129 = vector.extract_strided_slice %74 {offsets = [0, 24], sizes = [8, 8], strides = [1, 1]} : vector<8x32xf32> to vector<8x8xf32>
    %cst_52 = arith.constant dense<0.000000e+00> : vector<8x8xf32>
    %130 = tpu.matmul %128, %129, %cst_52 {dimension_numbers = #tpu.dot_dimension_numbers<[1], [1], [0], [0], [0, 0, 1, 0], [], []>} : vector<8x8xf32>, vector<8x8xf32>, vector<8x8xf32> -> vector<8x8xf32>
    %131 = vector.broadcast %76 : vector<1x8xf32> to vector<8x8xf32>
    %132 = arith.addf %130, %131 : vector<8x8xf32>
    %cst_53 = arith.constant dense<0xFF800000> : vector<8xf32>
    %133 = vector.multi_reduction <maximumf>, %132, %cst_53 [1] : vector<8x8xf32> to vector<8xf32>
    %134 = vector.shape_cast %133 : vector<8xf32> to vector<8x1xf32>
    %135 = vector.broadcast %134 : vector<8x1xf32> to vector<8x8xf32>
    %136 = arith.subf %132, %135 : vector<8x8xf32>
    %137 = math.exp %136 : vector<8x8xf32>
    %cst_54 = arith.constant dense<0.000000e+00> : vector<8xf32>
    %138 = vector.multi_reduction <add>, %137, %cst_54 [1] : vector<8x8xf32> to vector<8xf32>
    %139 = vector.shape_cast %138 : vector<8xf32> to vector<8x1xf32>
    %140 = tpu.reciprocal %139 : vector<8x1xf32> -> vector<8x1xf32>
    %141 = vector.broadcast %140 : vector<8x1xf32> to vector<8x8xf32>
    %142 = arith.mulf %137, %141 : vector<8x8xf32>
    %143 = vector.extract_strided_slice %75 {offsets = [0, 24], sizes = [8, 8], strides = [1, 1]} : vector<8x32xf32> to vector<8x8xf32>
    %cst_55 = arith.constant dense<0.000000e+00> : vector<8x8xf32>
    %144 = tpu.matmul %142, %143, %cst_55 {dimension_numbers = #tpu.dot_dimension_numbers<[1], [0], [0], [1], [0, 0, 1, 1], [], []>} : vector<8x8xf32>, vector<8x8xf32>, vector<8x8xf32> -> vector<8x8xf32>
    %145 = tpu.concatenate %93, %110, %127, %144 in 1 : vector<8x8xf32>, vector<8x8xf32>, vector<8x8xf32>, vector<8x8xf32> -> vector<8x32xf32>
    %cst_56 = arith.constant dense<0.000000e+00> : vector<8x32xf32>
    %146 = tpu.matmul %145, %12, %cst_56 {dimension_numbers = #tpu.dot_dimension_numbers<[1], [0], [0], [1], [0, 0, 1, 1], [], []>} : vector<8x32xf32>, vector<32x32xf32>, vector<8x32xf32> -> vector<8x32xf32>
    %147 = vector.broadcast %5 : vector<1x32xf32> to vector<8x32xf32>
    %148 = arith.addf %146, %147 : vector<8x32xf32>
    %149 = arith.addf %148, %64 : vector<8x32xf32>
    %cst_57 = arith.constant dense<0.000000e+00> : vector<8xf32>
    %150 = vector.multi_reduction <add>, %149, %cst_57 [1] : vector<8x32xf32> to vector<8xf32>
    %151 = vector.shape_cast %150 : vector<8xf32> to vector<8x1xf32>
    %cst_58 = arith.constant 3.200000e+01 : f32
    %152 = vector.broadcast %cst_58 : f32 to vector<8x1xf32>
    %153 = arith.divf %151, %152 : vector<8x1xf32>
    %154 = vector.broadcast %153 : vector<8x1xf32> to vector<8x32xf32>
    %155 = arith.subf %149, %154 : vector<8x32xf32>
    %156 = arith.mulf %155, %155 : vector<8x32xf32>
    %cst_59 = arith.constant dense<0.000000e+00> : vector<8xf32>
    %157 = vector.multi_reduction <add>, %156, %cst_59 [1] : vector<8x32xf32> to vector<8xf32>
    %158 = vector.shape_cast %157 : vector<8xf32> to vector<8x1xf32>
    %cst_60 = arith.constant 3.200000e+01 : f32
    %159 = vector.broadcast %cst_60 : f32 to vector<8x1xf32>
    %160 = arith.divf %158, %159 : vector<8x1xf32>
    %161 = vector.broadcast %153 : vector<8x1xf32> to vector<8x32xf32>
    %162 = arith.subf %149, %161 : vector<8x32xf32>
    %cst_61 = arith.constant 9.99999974E-6 : f32
    %163 = vector.broadcast %cst_61 : f32 to vector<8x1xf32>
    %164 = arith.addf %160, %163 : vector<8x1xf32>
    %165 = math.rsqrt %164 : vector<8x1xf32>
    %166 = vector.broadcast %165 : vector<8x1xf32> to vector<8x32xf32>
    %167 = arith.mulf %162, %166 : vector<8x32xf32>
    %168 = vector.broadcast %6 : vector<1x32xf32> to vector<8x32xf32>
    %169 = arith.mulf %167, %168 : vector<8x32xf32>
    %170 = vector.broadcast %7 : vector<1x32xf32> to vector<8x32xf32>
    %171 = arith.addf %169, %170 : vector<8x32xf32>
    %cst_62 = arith.constant dense<0.000000e+00> : vector<8x96xf32>
    %172 = tpu.matmul %171, %10, %cst_62 {dimension_numbers = #tpu.dot_dimension_numbers<[1], [0], [0], [1], [0, 0, 1, 1], [], []>} : vector<8x32xf32>, vector<32x96xf32>, vector<8x96xf32> -> vector<8x96xf32>
    %173 = vector.broadcast %11 : vector<1x96xf32> to vector<8x96xf32>
    %174 = arith.addf %172, %173 : vector<8x96xf32>
    %175 = vector.extract_strided_slice %174 {offsets = [0, 0], sizes = [8, 32], strides = [1, 1]} : vector<8x96xf32> to vector<8x32xf32>
    %176 = vector.extract_strided_slice %174 {offsets = [0, 32], sizes = [8, 32], strides = [1, 1]} : vector<8x96xf32> to vector<8x32xf32>
    %177 = vector.extract_strided_slice %174 {offsets = [0, 64], sizes = [8, 32], strides = [1, 1]} : vector<8x96xf32> to vector<8x32xf32>
    %178 = vector.shape_cast %69 : vector<1x1x8xf32> to vector<1x8xf32>
    %179 = vector.extract_strided_slice %175 {offsets = [0, 0], sizes = [8, 8], strides = [1, 1]} : vector<8x32xf32> to vector<8x8xf32>
    %180 = vector.extract_strided_slice %176 {offsets = [0, 0], sizes = [8, 8], strides = [1, 1]} : vector<8x32xf32> to vector<8x8xf32>
    %cst_63 = arith.constant dense<0.000000e+00> : vector<8x8xf32>
    %181 = tpu.matmul %179, %180, %cst_63 {dimension_numbers = #tpu.dot_dimension_numbers<[1], [1], [0], [0], [0, 0, 1, 0], [], []>} : vector<8x8xf32>, vector<8x8xf32>, vector<8x8xf32> -> vector<8x8xf32>
    %182 = vector.broadcast %178 : vector<1x8xf32> to vector<8x8xf32>
    %183 = arith.addf %181, %182 : vector<8x8xf32>
    %cst_64 = arith.constant dense<0xFF800000> : vector<8xf32>
    %184 = vector.multi_reduction <maximumf>, %183, %cst_64 [1] : vector<8x8xf32> to vector<8xf32>
    %185 = vector.shape_cast %184 : vector<8xf32> to vector<8x1xf32>
    %186 = vector.broadcast %185 : vector<8x1xf32> to vector<8x8xf32>
    %187 = arith.subf %183, %186 : vector<8x8xf32>
    %188 = math.exp %187 : vector<8x8xf32>
    %cst_65 = arith.constant dense<0.000000e+00> : vector<8xf32>
    %189 = vector.multi_reduction <add>, %188, %cst_65 [1] : vector<8x8xf32> to vector<8xf32>
    %190 = vector.shape_cast %189 : vector<8xf32> to vector<8x1xf32>
    %191 = tpu.reciprocal %190 : vector<8x1xf32> -> vector<8x1xf32>
    %192 = vector.broadcast %191 : vector<8x1xf32> to vector<8x8xf32>
    %193 = arith.mulf %188, %192 : vector<8x8xf32>
    %194 = vector.extract_strided_slice %177 {offsets = [0, 0], sizes = [8, 8], strides = [1, 1]} : vector<8x32xf32> to vector<8x8xf32>
    %cst_66 = arith.constant dense<0.000000e+00> : vector<8x8xf32>
    %195 = tpu.matmul %193, %194, %cst_66 {dimension_numbers = #tpu.dot_dimension_numbers<[1], [0], [0], [1], [0, 0, 1, 1], [], []>} : vector<8x8xf32>, vector<8x8xf32>, vector<8x8xf32> -> vector<8x8xf32>
    %196 = vector.extract_strided_slice %175 {offsets = [0, 8], sizes = [8, 8], strides = [1, 1]} : vector<8x32xf32> to vector<8x8xf32>
    %197 = vector.extract_strided_slice %176 {offsets = [0, 8], sizes = [8, 8], strides = [1, 1]} : vector<8x32xf32> to vector<8x8xf32>
    %cst_67 = arith.constant dense<0.000000e+00> : vector<8x8xf32>
    %198 = tpu.matmul %196, %197, %cst_67 {dimension_numbers = #tpu.dot_dimension_numbers<[1], [1], [0], [0], [0, 0, 1, 0], [], []>} : vector<8x8xf32>, vector<8x8xf32>, vector<8x8xf32> -> vector<8x8xf32>
    %199 = vector.broadcast %178 : vector<1x8xf32> to vector<8x8xf32>
    %200 = arith.addf %198, %199 : vector<8x8xf32>
    %cst_68 = arith.constant dense<0xFF800000> : vector<8xf32>
    %201 = vector.multi_reduction <maximumf>, %200, %cst_68 [1] : vector<8x8xf32> to vector<8xf32>
    %202 = vector.shape_cast %201 : vector<8xf32> to vector<8x1xf32>
    %203 = vector.broadcast %202 : vector<8x1xf32> to vector<8x8xf32>
    %204 = arith.subf %200, %203 : vector<8x8xf32>
    %205 = math.exp %204 : vector<8x8xf32>
    %cst_69 = arith.constant dense<0.000000e+00> : vector<8xf32>
    %206 = vector.multi_reduction <add>, %205, %cst_69 [1] : vector<8x8xf32> to vector<8xf32>
    %207 = vector.shape_cast %206 : vector<8xf32> to vector<8x1xf32>
    %208 = tpu.reciprocal %207 : vector<8x1xf32> -> vector<8x1xf32>
    %209 = vector.broadcast %208 : vector<8x1xf32> to vector<8x8xf32>
    %210 = arith.mulf %205, %209 : vector<8x8xf32>
    %211 = vector.extract_strided_slice %177 {offsets = [0, 8], sizes = [8, 8], strides = [1, 1]} : vector<8x32xf32> to vector<8x8xf32>
    %cst_70 = arith.constant dense<0.000000e+00> : vector<8x8xf32>
    %212 = tpu.matmul %210, %211, %cst_70 {dimension_numbers = #tpu.dot_dimension_numbers<[1], [0], [0], [1], [0, 0, 1, 1], [], []>} : vector<8x8xf32>, vector<8x8xf32>, vector<8x8xf32> -> vector<8x8xf32>
    %213 = vector.extract_strided_slice %175 {offsets = [0, 16], sizes = [8, 8], strides = [1, 1]} : vector<8x32xf32> to vector<8x8xf32>
    %214 = vector.extract_strided_slice %176 {offsets = [0, 16], sizes = [8, 8], strides = [1, 1]} : vector<8x32xf32> to vector<8x8xf32>
    %cst_71 = arith.constant dense<0.000000e+00> : vector<8x8xf32>
    %215 = tpu.matmul %213, %214, %cst_71 {dimension_numbers = #tpu.dot_dimension_numbers<[1], [1], [0], [0], [0, 0, 1, 0], [], []>} : vector<8x8xf32>, vector<8x8xf32>, vector<8x8xf32> -> vector<8x8xf32>
    %216 = vector.broadcast %178 : vector<1x8xf32> to vector<8x8xf32>
    %217 = arith.addf %215, %216 : vector<8x8xf32>
    %cst_72 = arith.constant dense<0xFF800000> : vector<8xf32>
    %218 = vector.multi_reduction <maximumf>, %217, %cst_72 [1] : vector<8x8xf32> to vector<8xf32>
    %219 = vector.shape_cast %218 : vector<8xf32> to vector<8x1xf32>
    %220 = vector.broadcast %219 : vector<8x1xf32> to vector<8x8xf32>
    %221 = arith.subf %217, %220 : vector<8x8xf32>
    %222 = math.exp %221 : vector<8x8xf32>
    %cst_73 = arith.constant dense<0.000000e+00> : vector<8xf32>
    %223 = vector.multi_reduction <add>, %222, %cst_73 [1] : vector<8x8xf32> to vector<8xf32>
    %224 = vector.shape_cast %223 : vector<8xf32> to vector<8x1xf32>
    %225 = tpu.reciprocal %224 : vector<8x1xf32> -> vector<8x1xf32>
    %226 = vector.broadcast %225 : vector<8x1xf32> to vector<8x8xf32>
    %227 = arith.mulf %222, %226 : vector<8x8xf32>
    %228 = vector.extract_strided_slice %177 {offsets = [0, 16], sizes = [8, 8], strides = [1, 1]} : vector<8x32xf32> to vector<8x8xf32>
    %cst_74 = arith.constant dense<0.000000e+00> : vector<8x8xf32>
    %229 = tpu.matmul %227, %228, %cst_74 {dimension_numbers = #tpu.dot_dimension_numbers<[1], [0], [0], [1], [0, 0, 1, 1], [], []>} : vector<8x8xf32>, vector<8x8xf32>, vector<8x8xf32> -> vector<8x8xf32>
    %230 = vector.extract_strided_slice %175 {offsets = [0, 24], sizes = [8, 8], strides = [1, 1]} : vector<8x32xf32> to vector<8x8xf32>
    %231 = vector.extract_strided_slice %176 {offsets = [0, 24], sizes = [8, 8], strides = [1, 1]} : vector<8x32xf32> to vector<8x8xf32>
    %cst_75 = arith.constant dense<0.000000e+00> : vector<8x8xf32>
    %232 = tpu.matmul %230, %231, %cst_75 {dimension_numbers = #tpu.dot_dimension_numbers<[1], [1], [0], [0], [0, 0, 1, 0], [], []>} : vector<8x8xf32>, vector<8x8xf32>, vector<8x8xf32> -> vector<8x8xf32>
    %233 = vector.broadcast %178 : vector<1x8xf32> to vector<8x8xf32>
    %234 = arith.addf %232, %233 : vector<8x8xf32>
    %cst_76 = arith.constant dense<0xFF800000> : vector<8xf32>
    %235 = vector.multi_reduction <maximumf>, %234, %cst_76 [1] : vector<8x8xf32> to vector<8xf32>
    %236 = vector.shape_cast %235 : vector<8xf32> to vector<8x1xf32>
    %237 = vector.broadcast %236 : vector<8x1xf32> to vector<8x8xf32>
    %238 = arith.subf %234, %237 : vector<8x8xf32>
    %239 = math.exp %238 : vector<8x8xf32>
    %cst_77 = arith.constant dense<0.000000e+00> : vector<8xf32>
    %240 = vector.multi_reduction <add>, %239, %cst_77 [1] : vector<8x8xf32> to vector<8xf32>
    %241 = vector.shape_cast %240 : vector<8xf32> to vector<8x1xf32>
    %242 = tpu.reciprocal %241 : vector<8x1xf32> -> vector<8x1xf32>
    %243 = vector.broadcast %242 : vector<8x1xf32> to vector<8x8xf32>
    %244 = arith.mulf %239, %243 : vector<8x8xf32>
    %245 = vector.extract_strided_slice %177 {offsets = [0, 24], sizes = [8, 8], strides = [1, 1]} : vector<8x32xf32> to vector<8x8xf32>
    %cst_78 = arith.constant dense<0.000000e+00> : vector<8x8xf32>
    %246 = tpu.matmul %244, %245, %cst_78 {dimension_numbers = #tpu.dot_dimension_numbers<[1], [0], [0], [1], [0, 0, 1, 1], [], []>} : vector<8x8xf32>, vector<8x8xf32>, vector<8x8xf32> -> vector<8x8xf32>
    %247 = tpu.concatenate %195, %212, %229, %246 in 1 : vector<8x8xf32>, vector<8x8xf32>, vector<8x8xf32>, vector<8x8xf32> -> vector<8x32xf32>
    %cst_79 = arith.constant dense<0.000000e+00> : vector<8x32xf32>
    %248 = tpu.matmul %247, %12, %cst_79 {dimension_numbers = #tpu.dot_dimension_numbers<[1], [0], [0], [1], [0, 0, 1, 1], [], []>} : vector<8x32xf32>, vector<32x32xf32>, vector<8x32xf32> -> vector<8x32xf32>
    %249 = vector.broadcast %5 : vector<1x32xf32> to vector<8x32xf32>
    %250 = arith.addf %248, %249 : vector<8x32xf32>
    %251 = arith.addf %250, %171 : vector<8x32xf32>
    %cst_80 = arith.constant dense<0.000000e+00> : vector<8xf32>
    %252 = vector.multi_reduction <add>, %251, %cst_80 [1] : vector<8x32xf32> to vector<8xf32>
    %253 = vector.shape_cast %252 : vector<8xf32> to vector<8x1xf32>
    %cst_81 = arith.constant 3.200000e+01 : f32
    %254 = vector.broadcast %cst_81 : f32 to vector<8x1xf32>
    %255 = arith.divf %253, %254 : vector<8x1xf32>
    %256 = vector.broadcast %255 : vector<8x1xf32> to vector<8x32xf32>
    %257 = arith.subf %251, %256 : vector<8x32xf32>
    %258 = arith.mulf %257, %257 : vector<8x32xf32>
    %cst_82 = arith.constant dense<0.000000e+00> : vector<8xf32>
    %259 = vector.multi_reduction <add>, %258, %cst_82 [1] : vector<8x32xf32> to vector<8xf32>
    %260 = vector.shape_cast %259 : vector<8xf32> to vector<8x1xf32>
    %cst_83 = arith.constant 3.200000e+01 : f32
    %261 = vector.broadcast %cst_83 : f32 to vector<8x1xf32>
    %262 = arith.divf %260, %261 : vector<8x1xf32>
    %263 = vector.broadcast %255 : vector<8x1xf32> to vector<8x32xf32>
    %264 = arith.subf %251, %263 : vector<8x32xf32>
    %cst_84 = arith.constant 9.99999974E-6 : f32
    %265 = vector.broadcast %cst_84 : f32 to vector<8x1xf32>
    %266 = arith.addf %262, %265 : vector<8x1xf32>
    %267 = math.rsqrt %266 : vector<8x1xf32>
    %268 = vector.broadcast %267 : vector<8x1xf32> to vector<8x32xf32>
    %269 = arith.mulf %264, %268 : vector<8x32xf32>
    %270 = vector.broadcast %6 : vector<1x32xf32> to vector<8x32xf32>
    %271 = arith.mulf %269, %270 : vector<8x32xf32>
    %272 = vector.broadcast %7 : vector<1x32xf32> to vector<8x32xf32>
    %273 = arith.addf %271, %272 : vector<8x32xf32>
    %cst_85 = arith.constant dense<0.000000e+00> : vector<32xf32>
    %274 = vector.multi_reduction <add>, %273, %cst_85 [0] : vector<8x32xf32> to vector<32xf32>
    %275 = vector.shape_cast %274 : vector<32xf32> to vector<1x32xf32>
    %cst_86 = arith.constant 1.250000e-01 : f32
    %276 = vector.broadcast %cst_86 : f32 to vector<1x32xf32>
    %277 = arith.mulf %275, %276 : vector<1x32xf32>
    %c0_87 = arith.constant 0 : index
    %c0_88 = arith.constant 0 : index
    %c0_89 = arith.constant 0 : index
    %278 = vector.load %arg10[%c0_87, %c0_88, %c0_89] : memref<1x1x32xf32, #tpu.memory_space<vmem>>, vector<1x1x32xf32>
    %279 = vector.shape_cast %278 : vector<1x1x32xf32> to vector<1x32xf32>
    %280 = vector.shape_cast %277 : vector<1x32xf32> to vector<1x1x32xf32>
    tpu.vector_store %arg10[%c0_87, %c0_88, %c0_89], %280 {strides = array<i32>} : memref<1x1x32xf32, #tpu.memory_space<vmem>>, vector<1x1x32xf32>,
    return
  }
  func.func @transform_0(%arg0: i32) -> (i32, i32, i32) {
    %c0_i32 = arith.constant 0 : i32
    %c0_i32_0 = arith.constant 0 : i32
    %c0_i32_1 = arith.constant 0 : i32
    return %arg0, %c0_i32, %c0_i32_0 : i32, i32, i32
  }
  func.func @transform_1(%arg0: i32) -> (i32, i32, i32) {
    %c0_i32 = arith.constant 0 : i32
    %c0_i32_0 = arith.constant 0 : i32
    %c0_i32_1 = arith.constant 0 : i32
    return %arg0, %c0_i32, %c0_i32_0 : i32, i32, i32
  }
  func.func @transform_2(%arg0: i32) -> (i32, i32) {
    %c0_i32 = arith.constant 0 : i32
    %c0_i32_0 = arith.constant 0 : i32
    %c0_i32_1 = arith.constant 0 : i32
    return %c0_i32, %c0_i32_0 : i32, i32
  }
  func.func @transform_3(%arg0: i32) -> (i32, i32) {
    %c0_i32 = arith.constant 0 : i32
    %c0_i32_0 = arith.constant 0 : i32
    %c0_i32_1 = arith.constant 0 : i32
    return %c0_i32, %c0_i32_0 : i32, i32
  }
  func.func @transform_4(%arg0: i32) -> (i32, i32) {
    %c0_i32 = arith.constant 0 : i32
    %c0_i32_0 = arith.constant 0 : i32
    %c0_i32_1 = arith.constant 0 : i32
    return %c0_i32, %c0_i32_0 : i32, i32
  }
  func.func @transform_5(%arg0: i32) -> (i32, i32) {
    %c0_i32 = arith.constant 0 : i32
    %c0_i32_0 = arith.constant 0 : i32
    %c0_i32_1 = arith.constant 0 : i32
    return %c0_i32, %c0_i32_0 : i32, i32
  }
  func.func @transform_6(%arg0: i32) -> (i32, i32) {
    %c0_i32 = arith.constant 0 : i32
    %c0_i32_0 = arith.constant 0 : i32
    %c0_i32_1 = arith.constant 0 : i32
    return %c0_i32, %c0_i32_0 : i32, i32
  }
  func.func @transform_7(%arg0: i32) -> (i32, i32) {
    %c0_i32 = arith.constant 0 : i32
    %c0_i32_0 = arith.constant 0 : i32
    %c0_i32_1 = arith.constant 0 : i32
    return %c0_i32, %c0_i32_0 : i32, i32
  }
  func.func @transform_8(%arg0: i32) -> (i32, i32) {
    %c0_i32 = arith.constant 0 : i32
    %c0_i32_0 = arith.constant 0 : i32
    %c0_i32_1 = arith.constant 0 : i32
    return %c0_i32, %c0_i32_0 : i32, i32
  }
  func.func @transform_9(%arg0: i32) -> (i32, i32, i32) {
    %c0_i32 = arith.constant 0 : i32
    %c0_i32_0 = arith.constant 0 : i32
    %c0_i32_1 = arith.constant 0 : i32
    return %arg0, %c0_i32, %c0_i32_0 : i32, i32, i32
  }
}

</mosaic_0001>

<llo_original>
// kernel: tpu_custom_call.1
$region0: #{tpu_custom_call.1}
  #allocation0 [shape = 'u32[]', space=smem, size = 0x4, offset = 0x4, fixed_abs, tag = 'smem constant byte address 0x4 - core index']
  #allocation1 [shape = 'u32[72,128]{1,0:T(1,128)}', space=vmem, size = 0x9000, scoped, tag = 'internal scratch']
  %s0 = inlined_call_operand.vmem [shape: f32[2,8,64], index: 0, kind: input, shape index: {}]
  %s1 = inlined_call_operand.hbm [shape: f32[2,1,8], index: 1, kind: input, shape index: {}]
  %s2 = inlined_call_operand.hbm [shape: f32[2,64], index: 2, kind: input, shape index: {}]
  %s3 = inlined_call_operand.vmem [shape: f32[64,32], index: 3, kind: input, shape index: {}]
  %s4 = inlined_call_operand.vmem [shape: f32[8,32], index: 4, kind: input, shape index: {}]
  %s5 = inlined_call_operand.vmem [shape: f32[6,32], index: 5, kind: input, shape index: {}]
  %s6 = inlined_call_operand.vmem [shape: f32[32,96], index: 6, kind: input, shape index: {}]
  %s7 = inlined_call_operand.vmem [shape: f32[1,96], index: 7, kind: input, shape index: {}]
  %s8 = inlined_call_operand.vmem [shape: f32[32,32], index: 8, kind: input, shape index: {}]
  %s9 = inlined_call_operand.hbm [shape: f32[2,1,32], index: 9, kind: output, shape index: {}]
  %s10 = sld [smem:[#allocation0]]
  $region77: #{tpu_custom_call.1} parent=0
    _
  %s12 = ssub.s32 1, %s10
  %s13 = scalar_select 0, %s12, %s10
  $region1: #{tpu_custom_call.1} parent=0
    #allocation2 [shape = 'u8[1024]{0}', space=vmem, size = 0x400, scoped, tag = 'input window, operand 1']
    #allocation3 [shape = 's32[2]{0}', space=sflag, size = 0x8, scoped, tag = 'scoped memory for tpu_custom_call.1']
    #allocation4 [shape = 's32[2]{0}', space=sflag, size = 0x8, scoped, tag = 'scoped memory for tpu_custom_call.1']
    #allocation5 [shape = 'u8[1024]{0}', space=vmem, size = 0x400, scoped, tag = 'input window, operand 2, single buffered']
    #allocation6 [shape = 's32[1]{0}', space=sflag, size = 0x4, scoped, tag = 'scoped memory for tpu_custom_call.1']
    #allocation7 [shape = 'u8[1024]{0}', space=vmem, size = 0x400, scoped, tag = 'output window, operand 0']
    %14 = vsyncpa [#allocation3], 0
    %s15 = scalar_lea.sflag [#allocation3], 1
    %16 = vsyncpa %s15, 0
    %17 = vsyncpa [#allocation6], 0
    %18 = vsyncpa [#allocation4], 0
    %s19 = scalar_lea.sflag [#allocation4], 1
    %20 = vsyncpa %s19, 0
    loop: start=0, step=1, limit=4
    $region2: #{tpu_custom_call.1} parent=1 // loop_pre_header
      _
    $region3: #{tpu_custom_call.1} parent=1 // loop_header
      %s22 = sphi 0, %s26
      %p23 = scmp.ge.s32.totalorder %s22, 4
      %s32 = sphi 0, %s34
      %s35 = sphi 0, %s32
      %s36 = sphi 0, %s35
      %s52 = sphi 0, %s36
      %s58 = sphi 0, %s60
      %s61 = sphi 0, %s58
      %s62 = sphi 0, %s61
      %s78 = sphi 0, %s62
      %s82 = sphi 0, %s82
      %s84 = sphi 0, %s82
      %s85 = sphi 0, %s84
      %s99 = sphi 0, %s85
      %s103 = sphi 0, %s103
      %s105 = sphi 0, %s103
      %s106 = sphi 0, %s105
      %s120 = sphi 0, %s106
      %s124 = sphi 0, %s124
      %s126 = sphi 0, %s124
      %s127 = sphi 0, %s126
      %s141 = sphi 0, %s127
      %s145 = sphi 0, %s145
      %s147 = sphi 0, %s145
      %s148 = sphi 0, %s147
      %s162 = sphi 0, %s148
      %s166 = sphi 0, %s166
      %s168 = sphi 0, %s166
      %s169 = sphi 0, %s168
      %s183 = sphi 0, %s169
      %s187 = sphi 0, %s187
      %s189 = sphi 0, %s187
      %s190 = sphi 0, %s189
      %s204 = sphi 0, %s190
      %s208 = sphi 0, %s208
      %s210 = sphi 0, %s208
      %s211 = sphi 0, %s210
      %s225 = sphi 0, %s211
      %s231 = sphi 0, %s233
      %s234 = sphi 0, %s231
      %s235 = sphi 0, %s234
      %s251 = sphi 0, %s235
    $region4: #{tpu_custom_call.1} parent=1 // loop_header_branch
      %25 = sbr.rel (%p23) target = $region8
    $region5: #{tpu_custom_call.1} parent=1 // loop_body
      %s27 = ssub.s32 %s22, 1
      %s28 = ssub.s32 %s22, 2
      %s29 = sadd.s32 %s22, 1
      %s30 = ssub.s32 %s22, %s29
      %p31 = scmp.eq.s32.totalorder %s30, 0
      %s33 = sadd.s32 %s32, 1
      %s34 = scalar_select %p31, %s32, %s33
      %p37 = pneg %p31
      %p38 = scmp.eq.s32.totalorder %s22, 1
      %p39 = por %p37, %p38
      %p40 = scmp.ne.s32.totalorder %s32, %s35
      %p41 = scmp.eq.s32.totalorder %s22, 0
      %p42 = por %p40, %p41
      %p43 = scmp.ne.s32.totalorder %s32, %s35
      %p44 = scmp.eq.s32.totalorder %s27, 1
      %p45 = por %p43, %p44
      %p46 = scmp.ne.s32.totalorder %s35, %s36
      %p47 = scmp.eq.s32.totalorder %s27, 0
      %p48 = por %p46, %p47
      %p49 = scmp.ne.s32.totalorder %s35, %s36
      %p50 = scmp.eq.s32.totalorder %s28, 1
      %p51 = por %p49, %p50
      %p53 = scmp.ne.s32.totalorder %s36, %s52
      %p54 = scmp.eq.s32.totalorder %s28, 0
      %p55 = por %p53, %p54
      %s56 = ssub.s32 %s22, %s29
      %p57 = scmp.eq.s32.totalorder %s56, 0
      %s59 = sadd.s32 %s58, 1
      %s60 = scalar_select %p57, %s58, %s59
      %p63 = pneg %p57
      %p64 = scmp.eq.s32.totalorder %s22, 1
      %p65 = por %p63, %p64
      %p66 = scmp.ne.s32.totalorder %s58, %s61
      %p67 = scmp.eq.s32.totalorder %s22, 0
      %p68 = por %p66, %p67
      %p69 = scmp.ne.s32.totalorder %s58, %s61
      %p70 = scmp.eq.s32.totalorder %s27, 1
      %p71 = por %p69, %p70
      %p72 = scmp.ne.s32.totalorder %s61, %s62
      %p73 = scmp.eq.s32.totalorder %s27, 0
      %p74 = por %p72, %p73
      %p75 = scmp.ne.s32.totalorder %s61, %s62
      %p76 = scmp.eq.s32.totalorder %s28, 1
      %p77 = por %p75, %p76
      %p79 = scmp.ne.s32.totalorder %s62, %s78
      %p80 = scmp.eq.s32.totalorder %s28, 0
      %p81 = por %p79, %p80
      %s83 = sadd.s32 %s82, 1
      %p86 = scmp.eq.s32.totalorder %s22, 1
      %p87 = scmp.ne.s32.totalorder %s82, %s84
      %p88 = scmp.eq.s32.totalorder %s22, 0
      %p89 = por %p87, %p88
      %p90 = scmp.ne.s32.totalorder %s82, %s84
      %p91 = scmp.eq.s32.totalorder %s27, 1
      %p92 = por %p90, %p91
      %p93 = scmp.ne.s32.totalorder %s84, %s85
      %p94 = scmp.eq.s32.totalorder %s27, 0
      %p95 = por %p93, %p94
      %p96 = scmp.ne.s32.totalorder %s84, %s85
      %p97 = scmp.eq.s32.totalorder %s28, 1
      %p98 = por %p96, %p97
      %p100 = scmp.ne.s32.totalorder %s85, %s99
      %p101 = scmp.eq.s32.totalorder %s28, 0
      %p102 = por %p100, %p101
      %s104 = sadd.s32 %s103, 1
      %p107 = scmp.eq.s32.totalorder %s22, 1
      %p108 = scmp.ne.s32.totalorder %s103, %s105
      %p109 = scmp.eq.s32.totalorder %s22, 0
      %p110 = por %p108, %p109
      %p111 = scmp.ne.s32.totalorder %s103, %s105
      %p112 = scmp.eq.s32.totalorder %s27, 1
      %p113 = por %p111, %p112
      %p114 = scmp.ne.s32.totalorder %s105, %s106
      %p115 = scmp.eq.s32.totalorder %s27, 0
      %p116 = por %p114, %p115
      %p117 = scmp.ne.s32.totalorder %s105, %s106
      %p118 = scmp.eq.s32.totalorder %s28, 1
      %p119 = por %p117, %p118
      %p121 = scmp.ne.s32.totalorder %s106, %s120
      %p122 = scmp.eq.s32.totalorder %s28, 0
      %p123 = por %p121, %p122
      %s125 = sadd.s32 %s124, 1
      %p128 = scmp.eq.s32.totalorder %s22, 1
      %p129 = scmp.ne.s32.totalorder %s124, %s126
      %p130 = scmp.eq.s32.totalorder %s22, 0
      %p131 = por %p129, %p130
      %p132 = scmp.ne.s32.totalorder %s124, %s126
      %p133 = scmp.eq.s32.totalorder %s27, 1
      %p134 = por %p132, %p133
      %p135 = scmp.ne.s32.totalorder %s126, %s127
      %p136 = scmp.eq.s32.totalorder %s27, 0
      %p137 = por %p135, %p136
      %p138 = scmp.ne.s32.totalorder %s126, %s127
      %p139 = scmp.eq.s32.totalorder %s28, 1
      %p140 = por %p138, %p139
      %p142 = scmp.ne.s32.totalorder %s127, %s141
      %p143 = scmp.eq.s32.totalorder %s28, 0
      %p144 = por %p142, %p143
      %s146 = sadd.s32 %s145, 1
      %p149 = scmp.eq.s32.totalorder %s22, 1
      %p150 = scmp.ne.s32.totalorder %s145, %s147
      %p151 = scmp.eq.s32.totalorder %s22, 0
      %p152 = por %p150, %p151
      %p153 = scmp.ne.s32.totalorder %s145, %s147
      %p154 = scmp.eq.s32.totalorder %s27, 1
      %p155 = por %p153, %p154
      %p156 = scmp.ne.s32.totalorder %s147, %s148
      %p157 = scmp.eq.s32.totalorder %s27, 0
      %p158 = por %p156, %p157
      %p159 = scmp.ne.s32.totalorder %s147, %s148
      %p160 = scmp.eq.s32.totalorder %s28, 1
      %p161 = por %p159, %p160
      %p163 = scmp.ne.s32.totalorder %s148, %s162
      %p164 = scmp.eq.s32.totalorder %s28, 0
      %p165 = por %p163, %p164
      %s167 = sadd.s32 %s166, 1
      %p170 = scmp.eq.s32.totalorder %s22, 1
      %p171 = scmp.ne.s32.totalorder %s166, %s168
      %p172 = scmp.eq.s32.totalorder %s22, 0
      %p173 = por %p171, %p172
      %p174 = scmp.ne.s32.totalorder %s166, %s168
      %p175 = scmp.eq.s32.totalorder %s27, 1
      %p176 = por %p174, %p175
      %p177 = scmp.ne.s32.totalorder %s168, %s169
      %p178 = scmp.eq.s32.totalorder %s27, 0
      %p179 = por %p177, %p178
      %p180 = scmp.ne.s32.totalorder %s168, %s169
      %p181 = scmp.eq.s32.totalorder %s28, 1
      %p182 = por %p180, %p181
      %p184 = scmp.ne.s32.totalorder %s169, %s183
      %p185 = scmp.eq.s32.totalorder %s28, 0
      %p186 = por %p184, %p185
      %s188 = sadd.s32 %s187, 1
      %p191 = scmp.eq.s32.totalorder %s22, 1
      %p192 = scmp.ne.s32.totalorder %s187, %s189
      %p193 = scmp.eq.s32.totalorder %s22, 0
      %p194 = por %p192, %p193
      %p195 = scmp.ne.s32.totalorder %s187, %s189
      %p196 = scmp.eq.s32.totalorder %s27, 1
      %p197 = por %p195, %p196
      %p198 = scmp.ne.s32.totalorder %s189, %s190
      %p199 = scmp.eq.s32.totalorder %s27, 0
      %p200 = por %p198, %p199
      %p201 = scmp.ne.s32.totalorder %s189, %s190
      %p202 = scmp.eq.s32.totalorder %s28, 1
      %p203 = por %p201, %p202
      %p205 = scmp.ne.s32.totalorder %s190, %s204
      %p206 = scmp.eq.s32.totalorder %s28, 0
      %p207 = por %p205, %p206
      %s209 = sadd.s32 %s208, 1
      %p212 = scmp.eq.s32.totalorder %s22, 1
      %p213 = scmp.ne.s32.totalorder %s208, %s210
      %p214 = scmp.eq.s32.totalorder %s22, 0
      %p215 = por %p213, %p214
      %p216 = scmp.ne.s32.totalorder %s208, %s210
      %p217 = scmp.eq.s32.totalorder %s27, 1
      %p218 = por %p216, %p217
      %p219 = scmp.ne.s32.totalorder %s210, %s211
      %p220 = scmp.eq.s32.totalorder %s27, 0
      %p221 = por %p219, %p220
      %p222 = scmp.ne.s32.totalorder %s210, %s211
      %p223 = scmp.eq.s32.totalorder %s28, 1
      %p224 = por %p222, %p223
      %p226 = scmp.ne.s32.totalorder %s211, %s225
      %p227 = scmp.eq.s32.totalorder %s28, 0
      %p228 = por %p226, %p227
      %s229 = ssub.s32 %s22, %s29
      %p230 = scmp.eq.s32.totalorder %s229, 0
      %s232 = sadd.s32 %s231, 1
      %s233 = scalar_select %p230, %s231, %s232
      %p236 = pneg %p230
      %p237 = scmp.eq.s32.totalorder %s22, 1
      %p238 = por %p236, %p237
      %p239 = scmp.ne.s32.totalorder %s231, %s234
      %p240 = scmp.eq.s32.totalorder %s22, 0
      %p241 = por %p239, %p240
      %p242 = scmp.ne.s32.totalorder %s231, %s234
      %p243 = scmp.eq.s32.totalorder %s27, 1
      %p244 = por %p242, %p243
      %p245 = scmp.ne.s32.totalorder %s234, %s235
      %p246 = scmp.eq.s32.totalorder %s27, 0
      %p247 = por %p245, %p246
      %p248 = scmp.ne.s32.totalorder %s234, %s235
      %p249 = scmp.eq.s32.totalorder %s28, 1
      %p250 = por %p248, %p249
      %p252 = scmp.ne.s32.totalorder %s235, %s251
      %p253 = scmp.eq.s32.totalorder %s28, 0
      %p254 = por %p252, %p253
      %p255 = scmp.le.s32.totalorder 1, %s22
      %p256 = scmp.lt.s32.totalorder %s22, 3
      %p257 = pnand %p255, %p256
      %p258 = pneg %p257
      // Predicated region
      $region9: #{tpu_custom_call.1} parent=5 // pred_check
        _
      $region10: #{tpu_custom_call.1} parent=5 // pred_check_branch
        %260 = sbr.rel (%p257) target = $region12
      $region11: #{tpu_custom_call.1} parent=5 // pred_region
        %s261 = ssub.s32 %s22, 1
        // Predicated region
        $region13: #{tpu_custom_call.1} parent=11 // pred_check
          %p262 = pneg %p95
        $region14: #{tpu_custom_call.1} parent=11 // pred_check_branch
          %264 = sbr.rel (%p262) target = $region16
        $region15: #{tpu_custom_call.1} parent=11 // pred_region
          %266 = vsyncadd [#allocation6], 0
          %s268 = sshll.u32 %s2, 4
          %s269 = int_to_ptr.hbm [resolvable:$true] %s268
          %s270 = sshll.u32 [#allocation5], 4
          %s271 = int_to_ptr.vmem [resolvable:$true] %s270
          %273 = dma.hbm_to_vmem [thread:$0]  %s269, 32, %s271, [#allocation6]
        $region16: #{tpu_custom_call.1} parent=11 // pred_fallthru
          _
        // Predicated region
        $region17: #{tpu_custom_call.1} parent=11 // pred_check
          %p274 = pneg %p116
        $region18: #{tpu_custom_call.1} parent=11 // pred_check_branch
          %276 = sbr.rel (%p274) target = $region20
        $region19: #{tpu_custom_call.1} parent=11 // pred_region
          _
        $region20: #{tpu_custom_call.1} parent=11 // pred_fallthru
          _
        // Predicated region
        $region21: #{tpu_custom_call.1} parent=11 // pred_check
          %p277 = pneg %p137
        $region22: #{tpu_custom_call.1} parent=11 // pred_check_branch
          %279 = sbr.rel (%p277) target = $region24
        $region23: #{tpu_custom_call.1} parent=11 // pred_region
          _
        $region24: #{tpu_custom_call.1} parent=11 // pred_fallthru
          _
        // Predicated region
        $region25: #{tpu_custom_call.1} parent=11 // pred_check
          %p280 = pneg %p158
        $region26: #{tpu_custom_call.1} parent=11 // pred_check_branch
          %282 = sbr.rel (%p280) target = $region28
        $region27: #{tpu_custom_call.1} parent=11 // pred_region
          _
        $region28: #{tpu_custom_call.1} parent=11 // pred_fallthru
          _
        // Predicated region
        $region29: #{tpu_custom_call.1} parent=11 // pred_check
          %p283 = pneg %p179
        $region30: #{tpu_custom_call.1} parent=11 // pred_check_branch
          %285 = sbr.rel (%p283) target = $region32
        $region31: #{tpu_custom_call.1} parent=11 // pred_region
          _
        $region32: #{tpu_custom_call.1} parent=11 // pred_fallthru
          _
        // Predicated region
        $region33: #{tpu_custom_call.1} parent=11 // pred_check
          %p286 = pneg %p200
        $region34: #{tpu_custom_call.1} parent=11 // pred_check_branch
          %288 = sbr.rel (%p286) target = $region36
        $region35: #{tpu_custom_call.1} parent=11 // pred_region
          _
        $region36: #{tpu_custom_call.1} parent=11 // pred_fallthru
          _
        // Predicated region
        $region37: #{tpu_custom_call.1} parent=11 // pred_check
          %p289 = pneg %p221
        $region38: #{tpu_custom_call.1} parent=11 // pred_check_branch
          %291 = sbr.rel (%p289) target = $region40
        $region39: #{tpu_custom_call.1} parent=11 // pred_region
          _
        $region40: #{tpu_custom_call.1} parent=11 // pred_fallthru
          _
      $region12: #{tpu_custom_call.1} parent=5 // pred_fallthru
        _
      %p292 = scmp.lt.s32.totalorder %s22, 2
      // Predicated region
      $region41: #{tpu_custom_call.1} parent=5 // pred_check
        %p293 = pneg %p292
      $region42: #{tpu_custom_call.1} parent=5 // pred_check_branch
        %295 = sbr.rel (%p293) target = $region44
      $region43: #{tpu_custom_call.1} parent=5 // pred_region
        // Predicated region
        $region45: #{tpu_custom_call.1} parent=43 // pred_check
          %p296 = pneg %p42
        $region46: #{tpu_custom_call.1} parent=43 // pred_check_branch
          %298 = sbr.rel (%p296) target = $region48
        $region47: #{tpu_custom_call.1} parent=43 // pred_region
          %p299 = scmp.lt.s32.totalorder %s22, 1
          %s300 = scalar_select %p299, %s22, 1
          %s301 = smul.addr %s300, 8
          %s302 = scalar_lea.vmem %s0, %s301
        $region48: #{tpu_custom_call.1} parent=43 // pred_fallthru
          _
        // Predicated region
        $region49: #{tpu_custom_call.1} parent=43 // pred_check
          %p303 = pneg %p68
        $region50: #{tpu_custom_call.1} parent=43 // pred_check_branch
          %305 = sbr.rel (%p303) target = $region52
        $region51: #{tpu_custom_call.1} parent=43 // pred_region
          %s306 = sand.u32 %s58, 1
          %s307 = scalar_lea.sflag [#allocation3], %s306
          %s308 = sand.u32 %s58, 1
          %s309 = scalar_lea.vmem [#allocation2], %s308
          %311 = vsyncadd %s307, 0
          %s312 = scalar_lea.hbm %s1, %s22
          %s314 = sshll.u32 %s312, 4
          %s315 = int_to_ptr.hbm [resolvable:$true] %s314
          %s316 = sshll.u32 %s309, 4
          %s317 = int_to_ptr.vmem [resolvable:$true] %s316
          %319 = dma.hbm_to_vmem [thread:$0]  %s315, 16, %s317, %s307
        $region52: #{tpu_custom_call.1} parent=43 // pred_fallthru
          _
      $region44: #{tpu_custom_call.1} parent=5 // pred_fallthru
        _
      %p320 = scmp.le.s32.totalorder 1, %s22
      %p321 = scmp.lt.s32.totalorder %s22, 3
      %p322 = pnand %p320, %p321
      %p323 = pneg %p322
      // Predicated region
      $region53: #{tpu_custom_call.1} parent=5 // pred_check
        _
      $region54: #{tpu_custom_call.1} parent=5 // pred_check_branch
        %325 = sbr.rel (%p322) target = $region56
      $region55: #{tpu_custom_call.1} parent=5 // pred_region
        %s326 = ssub.s32 %s22, 1
        %s327 = sand.u32 %s61, 1
        %s328 = scalar_lea.sflag [#allocation3], %s327
        %s329 = sand.u32 %s61, 1
        %s330 = scalar_lea.vmem [#allocation2], %s329
        // Predicated region
        $region57: #{tpu_custom_call.1} parent=55 // pred_check
          %p331 = pneg %p74
        $region58: #{tpu_custom_call.1} parent=55 // pred_check_branch
          %333 = sbr.rel (%p331) target = $region60
        $region59: #{tpu_custom_call.1} parent=55 // pred_region
          %335 = dma.done %s328, 16
        $region60: #{tpu_custom_call.1} parent=55 // pred_fallthru
          _
        // Predicated region
        $region61: #{tpu_custom_call.1} parent=55 // pred_check
          %p336 = pneg %p95
        $region62: #{tpu_custom_call.1} parent=55 // pred_check_branch
          %338 = sbr.rel (%p336) target = $region64
        $region63: #{tpu_custom_call.1} parent=55 // pred_region
          %340 = dma.done [#allocation6], 32
        $region64: #{tpu_custom_call.1} parent=55 // pred_fallthru
          _
        %p341 = scmp.lt.s32.totalorder %s27, 1
        %s342 = scalar_select %p341, %s27, 1
        %s343 = smul.addr %s342, 8
        %s344 = scalar_lea.vmem %s0, %s343
        %p345 = pneg %p48
        %p346 = pneg %p45
        %s347 = sand.u32 %s61, 1
        %s348 = scalar_lea.sflag [#allocation3], %s347
        %s349 = sand.u32 %s61, 1
        %s350 = scalar_lea.vmem [#allocation2], %s349
        %p351 = pneg %p74
        %p352 = pneg %p71
        %p353 = pneg %p95
        %p354 = pneg %p92
        %p355 = pneg %p116
        %p356 = pneg %p113
        %p357 = pneg %p137
        %p358 = pneg %p134
        %p359 = pneg %p158
        %p360 = pneg %p155
        %p361 = pneg %p179
        %p362 = pneg %p176
        %p363 = pneg %p200
        %p364 = pneg %p197
        %p365 = pneg %p221
        %p366 = pneg %p218
        %p367 = pneg %p247
        %p368 = pneg %p244
        %s369 = sand.u32 %s234, 1
        %s370 = scalar_lea.sflag [#allocation4], %s369
        %s371 = sand.u32 %s234, 1
        %s372 = scalar_lea.vmem [#allocation7], %s371
        %p373 = scmp.lt.s32.totalorder %s27, 1
        %s374 = scalar_select %p373, %s27, 1
        %s375 = smul.addr %s374, 8
        %s376 = scalar_lea.vmem %s0, %s375
        %v377 = vld [vmem:[#allocation5] sm:$0x1]
        %v378 = vld [vmem:[#allocation5 + $0x1] sm:$0x1]
        %v379 = vld [vmem:[%s5] sm:$0x1]
        %v380 = vld [vmem:[%s5 + $0x1] sm:$0x1]
        %v381 = vld [vmem:[%s5 + $0x2] sm:$0x1]
        %v382 = vld [vmem:[%s5 + $0x3] sm:$0x1]
        %v383 = vld [vmem:[%s5 + $0x4] sm:$0x1]
        %v384 = vld [vmem:[%s5 + $0x5] sm:$0x1]
        %v385 = vld [vmem:[%s3] sm:$0xff]
        %v386 = vld [vmem:[%s3 + $0x8] sm:$0xff]
        %v387 = vld [vmem:[%s3 + $0x10] sm:$0xff]
        %v388 = vld [vmem:[%s3 + $0x18] sm:$0xff]
        %v389 = vld [vmem:[%s3 + $0x20] sm:$0xff]
        %v390 = vld [vmem:[%s3 + $0x28] sm:$0xff]
        %v391 = vld [vmem:[%s3 + $0x30] sm:$0xff]
        %v392 = vld [vmem:[%s3 + $0x38] sm:$0xff]
        %v393 = vld [vmem:[%s4] sm:$0xff]
        %v394 = vld [vmem:[%s6] sm:$0xff]
        %v395 = vld [vmem:[%s6 + $0x8] sm:$0xff]
        %v396 = vld [vmem:[%s6 + $0x10] sm:$0xff]
        %v397 = vld [vmem:[%s6 + $0x18] sm:$0xff]
        %v398 = vld [vmem:[%s7] sm:$0x1]
        %v399 = vld [vmem:[%s8] sm:$0xff]
        %v400 = vld [vmem:[%s8 + $0x8] sm:$0xff]
        %v401 = vld [vmem:[%s8 + $0x10] sm:$0xff]
        %v402 = vld [vmem:[%s8 + $0x18] sm:$0xff]
        %v403 = vld [vmem:[%s376] sm:$0xff]
        %vm404 = vcmask 523264
        %v405 = vsel %vm404, %v403, 0.0
        %406 = vadd.xlane.f32.xlu0 %v405
        %v407 = vpop.xlane.xlu0 %406
        %v408 = vrcp.pop 64.0
        %v409 = vmul.f32 64.0, %v408
        %v410 = vsub.f32 1.0, %v409
        %v411 = vmul.f32 %v408, %v410
        %v412 = vadd.f32 %v408, %v411
        %vm413 = vweird.f32 %v408
        %v414 = vsel %vm413, %v408, %v412
        %v415 = vmul.f32 %v407, %v414
        %v416 = vsub.f32 %v403, %v415
        %v417 = vmul.f32 %v416, %v416
        %v418 = vsel %vm404, %v417, 0.0
        %419 = vadd.xlane.f32.xlu0 %v418
        %v420 = vpop.xlane.xlu0 %419
        %v421 = vmul.f32 %v420, %v414
        %v422 = vadd.f32 %v421, 1e-05
        %v423 = vrsqrt.pop %v422
        %v424 = vmul.f32 %v423, %v422
        %v425 = vmul.f32 %v424, %v423
        %v426 = vmul.f32 0.5, %v425
        %v427 = vsub.f32 1.5, %v426
        %v428 = vmul.f32 %v423, %v427
        %vm429 = vweird.f32 %v422
        %vm430 = vweird.f32 %v423
        %vm431 = vmor %vm429, %vm430
        %v432 = vsel %vm431, %v423, %v428
        %v433 = vmul.f32 %v416, %v432
        %v434 = vperm.slane %v377, 0
        %v435 = vmul.f32 %v433, %v434
        %v436 = vperm.slane %v378, 0
        %v437 = vadd.f32 %v435, %v436
        %v438 = vperm.slane %v379, 0
        %v440 = vsel %vm404, %v437, 0
        %442 = vmatpush.msra.mxu0 0.0
        %443 = vmatpush.msra.mxu0 0.0
        %444 = vmatpush.msra.mxu0 0.0
        %445 = vmatpush.msra.mxu0 0.0
        %446 = vmatpush.msra.mxu0 0.0
        %447 = vmatpush.msra.mxu0 0.0
        %448 = vmatpush.msra.mxu0 0.0
        %449 = vmatpush.msra.mxu0 0.0
        %450 = vmatpush.msra.mxu0 %v392
        %451 = vmatpush.msra.mxu0 %v391
        %452 = vmatpush.msra.mxu0 %v390
        %453 = vmatpush.msra.mxu0 %v389
        %454 = vmatpush.msra.mxu0 %v388
        %455 = vmatpush.msra.mxu0 %v387
        %456 = vmatpush.msra.mxu0 %v386
        %457 = vmatpush.msra.mxu0 %v385
        %458 = vmatmul.f32.gmra.mxu0 %v440
        %v459 = vpop.f32.mrf.mxu0
        %v460 = vadd.f32 %v438, %v459
        %461 = vdwg.mxu0
        %v462 = vmax.f32 %v460, 0.0
        %v463 = vadd.f32 %v462, %v393
        %vm464 = vcmask 261120
        %v465 = vsel %vm464, %v463, 0.0
        %466 = vadd.xlane.f32.xlu0 %v465
        %v467 = vpop.xlane.xlu0 %466
        %v468 = vrcp.pop 32.0
        %v469 = vmul.f32 32.0, %v468
        %v470 = vsub.f32 1.0, %v469
        %v471 = vmul.f32 %v468, %v470
        %v472 = vadd.f32 %v468, %v471
        %vm473 = vweird.f32 %v468
        %v474 = vsel %vm473, %v468, %v472
        %v475 = vmul.f32 %v467, %v474
        %v476 = vsub.f32 %v463, %v475
        %v477 = vmul.f32 %v476, %v476
        %v478 = vsel %vm464, %v477, 0.0
        %479 = vadd.xlane.f32.xlu0 %v478
        %v480 = vpop.xlane.xlu0 %479
        %v481 = vmul.f32 %v480, %v474
        %v482 = vadd.f32 %v481, 1e-05
        %v483 = vrsqrt.pop %v482
        %v484 = vmul.f32 %v483, %v482
        %v485 = vmul.f32 %v484, %v483
        %v486 = vmul.f32 0.5, %v485
        %v487 = vsub.f32 1.5, %v486
        %v488 = vmul.f32 %v483, %v487
        %vm489 = vweird.f32 %v482
        %vm490 = vweird.f32 %v483
        %vm491 = vmor %vm489, %vm490
        %v492 = vsel %vm491, %v483, %v488
        %v493 = vmul.f32 %v476, %v492
        %v494 = vperm.slane %v380, 0
        %v495 = vmul.f32 %v493, %v494
        %v496 = vperm.slane %v381, 0
        %v497 = vadd.f32 %v495, %v496
        %v498 = vld [vmem:[%s330] sm:$0x1]
        %v499 = vsub.f32 1.0, %v498
        %v500 = vmul.f32 %v499, -10000.0
        %v502 = vperm.slane %v398, 0
        %v505 = vsel %vm464, %v497, 0
        %507 = vmatpush.msra.mxu0 0.0
        %508 = vmatpush.msra.mxu0 0.0
        %509 = vmatpush.msra.mxu0 0.0
        %510 = vmatpush.msra.mxu0 0.0
        %511 = vmatpush.msra.mxu0 0.0
        %512 = vmatpush.msra.mxu0 0.0
        %513 = vmatpush.msra.mxu0 0.0
        %514 = vmatpush.msra.mxu0 0.0
        %515 = vmatpush.msra.mxu0 0.0
        %516 = vmatpush.msra.mxu0 0.0
        %517 = vmatpush.msra.mxu0 0.0
        %518 = vmatpush.msra.mxu0 0.0
        %519 = vmatpush.msra.mxu0 %v397
        %520 = vmatpush.msra.mxu0 %v396
        %521 = vmatpush.msra.mxu0 %v395
        %522 = vmatpush.msra.mxu0 %v394
        %523 = vmatmul.f32.gmra.mxu0 %v505
        %v524 = vpop.f32.mrf.mxu0
        %v525 = vadd.f32 %v502, %v524
        %526 = vdwg.mxu0
        %v528 = vperm.slane %v500, 0
        %531 = vrot.lane.b32.xlu0 %v525, 96
        %v532 = vpop.permute.xlu0 %531
        %vm533 = vcmask 64512
        %v534 = vsel %vm533, %v525, 0
        %v536 = vsel %vm533, %v532, 0
        %538 = vmatpush.xpose.msra.mxu0 0.0
        %539 = vmatpush.xpose.msra.mxu0 0.0
        %540 = vmatpush.xpose.msra.mxu0 0.0
        %541 = vmatpush.xpose.msra.mxu0 0.0
        %542 = vmatpush.xpose.msra.mxu0 0.0
        %543 = vmatpush.xpose.msra.mxu0 0.0
        %544 = vmatpush.xpose.msra.mxu0 0.0
        %545 = vmatpush.xpose.msra.mxu0 0.0
        %546 = vmatpush.xpose.msra.mxu0 0.0
        %547 = vmatpush.xpose.msra.mxu0 0.0
        %548 = vmatpush.xpose.msra.mxu0 0.0
        %549 = vmatpush.xpose.msra.mxu0 0.0
        %550 = vmatpush.xpose.msra.mxu0 0.0
        %551 = vmatpush.xpose.msra.mxu0 0.0
        %552 = vmatpush.xpose.msra.mxu0 0.0
        %553 = vmatpush.xpose.msra.mxu0 %v536
        %554 = vmatmul.f32.gmra.mxu0 %v534
        %v555 = vpop.f32.mrf.mxu0
        %v556 = vadd.f32 %v528, %v555
        %557 = vdwg.mxu0
        %v558 = vsel %vm533, %v556, -inf
        %559 = vmax.xlane.f32.xlu0 %v558
        %v560 = vpop.xlane.xlu0 %559
        %v561 = vsub.f32 %v556, %v560
        %v562 = vmul.f32 %v561, 1.442695
        %v563 = vpow.pop %v562
        %v564 = vsel %vm533, %v563, 0.0
        %565 = vadd.xlane.f32.xlu0 %v564
        %v566 = vpop.xlane.xlu0 %565
        %v567 = vrcp.pop %v566
        %v568 = vmul.f32 %v566, %v567
        %v569 = vsub.f32 1.0, %v568
        %v570 = vmul.f32 %v567, %v569
        %v571 = vadd.f32 %v567, %v570
        %vm572 = vweird.f32 %v566
        %vm573 = vweird.f32 %v567
        %vm574 = vmor %vm572, %vm573
        %v575 = vsel %vm574, %v567, %v571
        %v576 = vand.u32 2147483647, %v566
        %vm577 = vcmp.eq.f32.partialorder %v576, 8.507059e+37
        %v578 = vand.u32 %v566, 2147483648
        %v579 = vor.u32 1.1754944e-38, %v578
        %v580 = vsel %vm577, %v579, %v575
        %v581 = vmul.f32 %v563, %v580
        %582 = vrot.lane.b32.xlu0 %v525, 64
        %v583 = vpop.permute.xlu0 %582
        %v586 = vsel %vm533, %v581, 0
        %588 = vmatpush.msra.mxu0 0.0
        %589 = vmatpush.msra.mxu0 0.0
        %590 = vmatpush.msra.mxu0 0.0
        %591 = vmatpush.msra.mxu0 0.0
        %592 = vmatpush.msra.mxu0 0.0
        %593 = vmatpush.msra.mxu0 0.0
        %594 = vmatpush.msra.mxu0 0.0
        %595 = vmatpush.msra.mxu0 0.0
        %596 = vmatpush.msra.mxu0 0.0
        %597 = vmatpush.msra.mxu0 0.0
        %598 = vmatpush.msra.mxu0 0.0
        %599 = vmatpush.msra.mxu0 0.0
        %600 = vmatpush.msra.mxu0 0.0
        %601 = vmatpush.msra.mxu0 0.0
        %602 = vmatpush.msra.mxu0 0.0
        %603 = vmatpush.msra.mxu0 %v583
        %604 = vmatmul.f32.gmra.mxu0 %v586
        %v605 = vpop.f32.mrf.mxu0
        %v606 = vadd.f32 0.0, %v605
        %607 = vdwg.mxu0
        %608 = vrot.lane.b32.xlu0 %v525, 120
        %v609 = vpop.permute.xlu0 %608
        %610 = vrot.lane.b32.xlu0 %v525, 88
        %v611 = vpop.permute.xlu0 %610
        %v612 = vsel %vm533, %v609, 0
        %v614 = vsel %vm533, %v611, 0
        %616 = vmatpush.xpose.msra.mxu0 0.0
        %617 = vmatpush.xpose.msra.mxu0 0.0
        %618 = vmatpush.xpose.msra.mxu0 0.0
        %619 = vmatpush.xpose.msra.mxu0 0.0
        %620 = vmatpush.xpose.msra.mxu0 0.0
        %621 = vmatpush.xpose.msra.mxu0 0.0
        %622 = vmatpush.xpose.msra.mxu0 0.0
        %623 = vmatpush.xpose.msra.mxu0 0.0
        %624 = vmatpush.xpose.msra.mxu0 0.0
        %625 = vmatpush.xpose.msra.mxu0 0.0
        %626 = vmatpush.xpose.msra.mxu0 0.0
        %627 = vmatpush.xpose.msra.mxu0 0.0
        %628 = vmatpush.xpose.msra.mxu0 0.0
        %629 = vmatpush.xpose.msra.mxu0 0.0
        %630 = vmatpush.xpose.msra.mxu0 0.0
        %631 = vmatpush.xpose.msra.mxu0 %v614
        %632 = vmatmul.f32.gmra.mxu0 %v612
        %v633 = vpop.f32.mrf.mxu0
        %v634 = vadd.f32 %v528, %v633
        %635 = vdwg.mxu0
        %v636 = vsel %vm533, %v634, -inf
        %637 = vmax.xlane.f32.xlu0 %v636
        %v638 = vpop.xlane.xlu0 %637
        %v639 = vsub.f32 %v634, %v638
        %v640 = vmul.f32 %v639, 1.442695
        %v641 = vpow.pop %v640
        %v642 = vsel %vm533, %v641, 0.0
        %643 = vadd.xlane.f32.xlu0 %v642
        %v644 = vpop.xlane.xlu0 %643
        %v645 = vrcp.pop %v644
        %v646 = vmul.f32 %v644, %v645
        %v647 = vsub.f32 1.0, %v646
        %v648 = vmul.f32 %v645, %v647
        %v649 = vadd.f32 %v645, %v648
        %vm650 = vweird.f32 %v644
        %vm651 = vweird.f32 %v645
        %vm652 = vmor %vm650, %vm651
        %v653 = vsel %vm652, %v645, %v649
        %v654 = vand.u32 2147483647, %v644
        %vm655 = vcmp.eq.f32.partialorder %v654, 8.507059e+37
        %v656 = vand.u32 %v644, 2147483648
        %v657 = vor.u32 1.1754944e-38, %v656
        %v658 = vsel %vm655, %v657, %v653
        %v659 = vmul.f32 %v641, %v658
        %660 = vrot.lane.b32.xlu0 %v525, 56
        %v661 = vpop.permute.xlu0 %660
        %v664 = vsel %vm533, %v659, 0
        %666 = vmatpush.msra.mxu0 0.0
        %667 = vmatpush.msra.mxu0 0.0
        %668 = vmatpush.msra.mxu0 0.0
        %669 = vmatpush.msra.mxu0 0.0
        %670 = vmatpush.msra.mxu0 0.0
        %671 = vmatpush.msra.mxu0 0.0
        %672 = vmatpush.msra.mxu0 0.0
        %673 = vmatpush.msra.mxu0 0.0
        %674 = vmatpush.msra.mxu0 0.0
        %675 = vmatpush.msra.mxu0 0.0
        %676 = vmatpush.msra.mxu0 0.0
        %677 = vmatpush.msra.mxu0 0.0
        %678 = vmatpush.msra.mxu0 0.0
        %679 = vmatpush.msra.mxu0 0.0
        %680 = vmatpush.msra.mxu0 0.0
        %681 = vmatpush.msra.mxu0 %v661
        %682 = vmatmul.f32.gmra.mxu0 %v664
        %v683 = vpop.f32.mrf.mxu0
        %v684 = vadd.f32 0.0, %v683
        %685 = vdwg.mxu0
        %686 = vrot.lane.b32.xlu0 %v525, 112
        %v687 = vpop.permute.xlu0 %686
        %688 = vrot.lane.b32.xlu0 %v525, 80
        %v689 = vpop.permute.xlu0 %688
        %v690 = vsel %vm533, %v687, 0
        %v692 = vsel %vm533, %v689, 0
        %694 = vmatpush.xpose.msra.mxu0 0.0
        %695 = vmatpush.xpose.msra.mxu0 0.0
        %696 = vmatpush.xpose.msra.mxu0 0.0
        %697 = vmatpush.xpose.msra.mxu0 0.0
        %698 = vmatpush.xpose.msra.mxu0 0.0
        %699 = vmatpush.xpose.msra.mxu0 0.0
        %700 = vmatpush.xpose.msra.mxu0 0.0
        %701 = vmatpush.xpose.msra.mxu0 0.0
        %702 = vmatpush.xpose.msra.mxu0 0.0
        %703 = vmatpush.xpose.msra.mxu0 0.0
        %704 = vmatpush.xpose.msra.mxu0 0.0
        %705 = vmatpush.xpose.msra.mxu0 0.0
        %706 = vmatpush.xpose.msra.mxu0 0.0
        %707 = vmatpush.xpose.msra.mxu0 0.0
        %708 = vmatpush.xpose.msra.mxu0 0.0
        %709 = vmatpush.xpose.msra.mxu0 %v692
        %710 = vmatmul.f32.gmra.mxu0 %v690
        %v711 = vpop.f32.mrf.mxu0
        %v712 = vadd.f32 %v528, %v711
        %713 = vdwg.mxu0
        %v714 = vsel %vm533, %v712, -inf
        %715 = vmax.xlane.f32.xlu0 %v714
        %v716 = vpop.xlane.xlu0 %715
        %v717 = vsub.f32 %v712, %v716
        %v718 = vmul.f32 %v717, 1.442695
        %v719 = vpow.pop %v718
        %v720 = vsel %vm533, %v719, 0.0
        %721 = vadd.xlane.f32.xlu0 %v720
        %v722 = vpop.xlane.xlu0 %721
        %v723 = vrcp.pop %v722
        %v724 = vmul.f32 %v722, %v723
        %v725 = vsub.f32 1.0, %v724
        %v726 = vmul.f32 %v723, %v725
        %v727 = vadd.f32 %v723, %v726
        %vm728 = vweird.f32 %v722
        %vm729 = vweird.f32 %v723
        %vm730 = vmor %vm728, %vm729
        %v731 = vsel %vm730, %v723, %v727
        %v732 = vand.u32 2147483647, %v722
        %vm733 = vcmp.eq.f32.partialorder %v732, 8.507059e+37
        %v734 = vand.u32 %v722, 2147483648
        %v735 = vor.u32 1.1754944e-38, %v734
        %v736 = vsel %vm733, %v735, %v731
        %v737 = vmul.f32 %v719, %v736
        %738 = vrot.lane.b32.xlu0 %v525, 48
        %v739 = vpop.permute.xlu0 %738
        %v742 = vsel %vm533, %v737, 0
        %744 = vmatpush.msra.mxu0 0.0
        %745 = vmatpush.msra.mxu0 0.0
        %746 = vmatpush.msra.mxu0 0.0
        %747 = vmatpush.msra.mxu0 0.0
        %748 = vmatpush.msra.mxu0 0.0
        %749 = vmatpush.msra.mxu0 0.0
        %750 = vmatpush.msra.mxu0 0.0
        %751 = vmatpush.msra.mxu0 0.0
        %752 = vmatpush.msra.mxu0 0.0
        %753 = vmatpush.msra.mxu0 0.0
        %754 = vmatpush.msra.mxu0 0.0
        %755 = vmatpush.msra.mxu0 0.0
        %756 = vmatpush.msra.mxu0 0.0
        %757 = vmatpush.msra.mxu0 0.0
        %758 = vmatpush.msra.mxu0 0.0
        %759 = vmatpush.msra.mxu0 %v739
        %760 = vmatmul.f32.gmra.mxu0 %v742
        %v761 = vpop.f32.mrf.mxu0
        %v762 = vadd.f32 0.0, %v761
        %763 = vdwg.mxu0
        %764 = vrot.lane.b32.xlu0 %v525, 104
        %v765 = vpop.permute.xlu0 %764
        %766 = vrot.lane.b32.xlu0 %v525, 72
        %v767 = vpop.permute.xlu0 %766
        %v768 = vsel %vm533, %v765, 0
        %v770 = vsel %vm533, %v767, 0
        %772 = vmatpush.xpose.msra.mxu0 0.0
        %773 = vmatpush.xpose.msra.mxu0 0.0
        %774 = vmatpush.xpose.msra.mxu0 0.0
        %775 = vmatpush.xpose.msra.mxu0 0.0
        %776 = vmatpush.xpose.msra.mxu0 0.0
        %777 = vmatpush.xpose.msra.mxu0 0.0
        %778 = vmatpush.xpose.msra.mxu0 0.0
        %779 = vmatpush.xpose.msra.mxu0 0.0
        %780 = vmatpush.xpose.msra.mxu0 0.0
        %781 = vmatpush.xpose.msra.mxu0 0.0
        %782 = vmatpush.xpose.msra.mxu0 0.0
        %783 = vmatpush.xpose.msra.mxu0 0.0
        %784 = vmatpush.xpose.msra.mxu0 0.0
        %785 = vmatpush.xpose.msra.mxu0 0.0
        %786 = vmatpush.xpose.msra.mxu0 0.0
        %787 = vmatpush.xpose.msra.mxu0 %v770
        %788 = vmatmul.f32.gmra.mxu0 %v768
        %v789 = vpop.f32.mrf.mxu0
        %v790 = vadd.f32 %v528, %v789
        %791 = vdwg.mxu0
        %v792 = vsel %vm533, %v790, -inf
        %793 = vmax.xlane.f32.xlu0 %v792
        %v794 = vpop.xlane.xlu0 %793
        %v795 = vsub.f32 %v790, %v794
        %v796 = vmul.f32 %v795, 1.442695
        %v797 = vpow.pop %v796
        %v798 = vsel %vm533, %v797, 0.0
        %799 = vadd.xlane.f32.xlu0 %v798
        %v800 = vpop.xlane.xlu0 %799
        %v801 = vrcp.pop %v800
        %v802 = vmul.f32 %v800, %v801
        %v803 = vsub.f32 1.0, %v802
        %v804 = vmul.f32 %v801, %v803
        %v805 = vadd.f32 %v801, %v804
        %vm806 = vweird.f32 %v800
        %vm807 = vweird.f32 %v801
        %vm808 = vmor %vm806, %vm807
        %v809 = vsel %vm808, %v801, %v805
        %v810 = vand.u32 2147483647, %v800
        %vm811 = vcmp.eq.f32.partialorder %v810, 8.507059e+37
        %v812 = vand.u32 %v800, 2147483648
        %v813 = vor.u32 1.1754944e-38, %v812
        %v814 = vsel %vm811, %v813, %v809
        %v815 = vmul.f32 %v797, %v814
        %816 = vrot.lane.b32.xlu0 %v525, 40
        %v817 = vpop.permute.xlu0 %816
        %v820 = vsel %vm533, %v815, 0
        %822 = vmatpush.msra.mxu0 0.0
        %823 = vmatpush.msra.mxu0 0.0
        %824 = vmatpush.msra.mxu0 0.0
        %825 = vmatpush.msra.mxu0 0.0
        %826 = vmatpush.msra.mxu0 0.0
        %827 = vmatpush.msra.mxu0 0.0
        %828 = vmatpush.msra.mxu0 0.0
        %829 = vmatpush.msra.mxu0 0.0
        %830 = vmatpush.msra.mxu0 0.0
        %831 = vmatpush.msra.mxu0 0.0
        %832 = vmatpush.msra.mxu0 0.0
        %833 = vmatpush.msra.mxu0 0.0
        %834 = vmatpush.msra.mxu0 0.0
        %835 = vmatpush.msra.mxu0 0.0
        %836 = vmatpush.msra.mxu0 0.0
        %837 = vmatpush.msra.mxu0 %v817
        %838 = vmatmul.f32.gmra.mxu0 %v820
        %v839 = vpop.f32.mrf.mxu0
        %v840 = vadd.f32 0.0, %v839
        %841 = vdwg.mxu0
        %843 = vrot.lane.b32.xlu0 %v684, 8
        %v844 = vpop.permute.xlu0 %843
        %847 = vrot.lane.b32.xlu0 %v762, 16
        %v848 = vpop.permute.xlu0 %847
        %851 = vrot.lane.b32.xlu0 %v840, 24
        %v852 = vpop.permute.xlu0 %851
        %v854 = vsel %vm533, %v606, %v844
        %vm855 = vcmask 130048
        %v856 = vsel %vm855, %v854, %v848
        %vm857 = vcmask 195584
        %v858 = vsel %vm857, %v856, %v852
        %v859 = vperm.slane %v382, 0
        %v861 = vsel %vm464, %v858, 0
        %863 = vmatpush.msra.mxu0 0.0
        %864 = vmatpush.msra.mxu0 0.0
        %865 = vmatpush.msra.mxu0 0.0
        %866 = vmatpush.msra.mxu0 0.0
        %867 = vmatpush.msra.mxu0 0.0
        %868 = vmatpush.msra.mxu0 0.0
        %869 = vmatpush.msra.mxu0 0.0
        %870 = vmatpush.msra.mxu0 0.0
        %871 = vmatpush.msra.mxu0 0.0
        %872 = vmatpush.msra.mxu0 0.0
        %873 = vmatpush.msra.mxu0 0.0
        %874 = vmatpush.msra.mxu0 0.0
        %875 = vmatpush.msra.mxu0 %v402
        %876 = vmatpush.msra.mxu0 %v401
        %877 = vmatpush.msra.mxu0 %v400
        %878 = vmatpush.msra.mxu0 %v399
        %879 = vmatmul.f32.gmra.mxu0 %v861
        %v880 = vpop.f32.mrf.mxu0
        %v881 = vadd.f32 %v859, %v880
        %882 = vdwg.mxu0
        %v883 = vadd.f32 %v881, %v497
        %v884 = vsel %vm464, %v883, 0.0
        %885 = vadd.xlane.f32.xlu0 %v884
        %v886 = vpop.xlane.xlu0 %885
        %v887 = vmul.f32 %v886, %v474
        %v888 = vsub.f32 %v883, %v887
        %v889 = vmul.f32 %v888, %v888
        %v890 = vsel %vm464, %v889, 0.0
        %891 = vadd.xlane.f32.xlu0 %v890
        %v892 = vpop.xlane.xlu0 %891
        %v893 = vmul.f32 %v892, %v474
        %v894 = vadd.f32 %v893, 1e-05
        %v895 = vrsqrt.pop %v894
        %v896 = vmul.f32 %v895, %v894
        %v897 = vmul.f32 %v896, %v895
        %v898 = vmul.f32 0.5, %v897
        %v899 = vsub.f32 1.5, %v898
        %v900 = vmul.f32 %v895, %v899
        %vm901 = vweird.f32 %v894
        %vm902 = vweird.f32 %v895
        %vm903 = vmor %vm901, %vm902
        %v904 = vsel %vm903, %v895, %v900
        %v905 = vmul.f32 %v888, %v904
        %v906 = vperm.slane %v383, 0
        %v907 = vmul.f32 %v905, %v906
        %v908 = vperm.slane %v384, 0
        %v909 = vadd.f32 %v907, %v908
        %v911 = vsel %vm464, %v909, 0
        %913 = vmatpush.msra.mxu0 0.0
        %914 = vmatpush.msra.mxu0 0.0
        %915 = vmatpush.msra.mxu0 0.0
        %916 = vmatpush.msra.mxu0 0.0
        %917 = vmatpush.msra.mxu0 0.0
        %918 = vmatpush.msra.mxu0 0.0
        %919 = vmatpush.msra.mxu0 0.0
        %920 = vmatpush.msra.mxu0 0.0
        %921 = vmatpush.msra.mxu0 0.0
        %922 = vmatpush.msra.mxu0 0.0
        %923 = vmatpush.msra.mxu0 0.0
        %924 = vmatpush.msra.mxu0 0.0
        %925 = vmatpush.msra.mxu0 %v397
        %926 = vmatpush.msra.mxu0 %v396
        %927 = vmatpush.msra.mxu0 %v395
        %928 = vmatpush.msra.mxu0 %v394
        %929 = vmatmul.f32.gmra.mxu0 %v911
        %v930 = vpop.f32.mrf.mxu0
        %v931 = vadd.f32 %v502, %v930
        %932 = vdwg.mxu0
        %934 = vrot.lane.b32.xlu0 %v931, 96
        %v935 = vpop.permute.xlu0 %934
        %v936 = vsel %vm533, %v931, 0
        %v938 = vsel %vm533, %v935, 0
        %940 = vmatpush.xpose.msra.mxu0 0.0
        %941 = vmatpush.xpose.msra.mxu0 0.0
        %942 = vmatpush.xpose.msra.mxu0 0.0
        %943 = vmatpush.xpose.msra.mxu0 0.0
        %944 = vmatpush.xpose.msra.mxu0 0.0
        %945 = vmatpush.xpose.msra.mxu0 0.0
        %946 = vmatpush.xpose.msra.mxu0 0.0
        %947 = vmatpush.xpose.msra.mxu0 0.0
        %948 = vmatpush.xpose.msra.mxu0 0.0
        %949 = vmatpush.xpose.msra.mxu0 0.0
        %950 = vmatpush.xpose.msra.mxu0 0.0
        %951 = vmatpush.xpose.msra.mxu0 0.0
        %952 = vmatpush.xpose.msra.mxu0 0.0
        %953 = vmatpush.xpose.msra.mxu0 0.0
        %954 = vmatpush.xpose.msra.mxu0 0.0
        %955 = vmatpush.xpose.msra.mxu0 %v938
        %956 = vmatmul.f32.gmra.mxu0 %v936
        %v957 = vpop.f32.mrf.mxu0
        %v958 = vadd.f32 %v528, %v957
        %959 = vdwg.mxu0
        %v960 = vsel %vm533, %v958, -inf
        %961 = vmax.xlane.f32.xlu0 %v960
        %v962 = vpop.xlane.xlu0 %961
        %v963 = vsub.f32 %v958, %v962
        %v964 = vmul.f32 %v963, 1.442695
        %v965 = vpow.pop %v964
        %v966 = vsel %vm533, %v965, 0.0
        %967 = vadd.xlane.f32.xlu0 %v966
        %v968 = vpop.xlane.xlu0 %967
        %v969 = vrcp.pop %v968
        %v970 = vmul.f32 %v968, %v969
        %v971 = vsub.f32 1.0, %v970
        %v972 = vmul.f32 %v969, %v971
        %v973 = vadd.f32 %v969, %v972
        %vm974 = vweird.f32 %v968
        %vm975 = vweird.f32 %v969
        %vm976 = vmor %vm974, %vm975
        %v977 = vsel %vm976, %v969, %v973
        %v978 = vand.u32 2147483647, %v968
        %vm979 = vcmp.eq.f32.partialorder %v978, 8.507059e+37
        %v980 = vand.u32 %v968, 2147483648
        %v981 = vor.u32 1.1754944e-38, %v980
        %v982 = vsel %vm979, %v981, %v977
        %v983 = vmul.f32 %v965, %v982
        %984 = vrot.lane.b32.xlu0 %v931, 64
        %v985 = vpop.permute.xlu0 %984
        %v988 = vsel %vm533, %v983, 0
        %990 = vmatpush.msra.mxu0 0.0
        %991 = vmatpush.msra.mxu0 0.0
        %992 = vmatpush.msra.mxu0 0.0
        %993 = vmatpush.msra.mxu0 0.0
        %994 = vmatpush.msra.mxu0 0.0
        %995 = vmatpush.msra.mxu0 0.0
        %996 = vmatpush.msra.mxu0 0.0
        %997 = vmatpush.msra.mxu0 0.0
        %998 = vmatpush.msra.mxu0 0.0
        %999 = vmatpush.msra.mxu0 0.0
        %1000 = vmatpush.msra.mxu0 0.0
        %1001 = vmatpush.msra.mxu0 0.0
        %1002 = vmatpush.msra.mxu0 0.0
        %1003 = vmatpush.msra.mxu0 0.0
        %1004 = vmatpush.msra.mxu0 0.0
        %1005 = vmatpush.msra.mxu0 %v985
        %1006 = vmatmul.f32.gmra.mxu0 %v988
        %v1007 = vpop.f32.mrf.mxu0
        %v1008 = vadd.f32 0.0, %v1007
        %1009 = vdwg.mxu0
        %1010 = vrot.lane.b32.xlu0 %v931, 120
        %v1011 = vpop.permute.xlu0 %1010
        %1012 = vrot.lane.b32.xlu0 %v931, 88
        %v1013 = vpop.permute.xlu0 %1012
        %v1014 = vsel %vm533, %v1011, 0
        %v1016 = vsel %vm533, %v1013, 0
        %1018 = vmatpush.xpose.msra.mxu0 0.0
        %1019 = vmatpush.xpose.msra.mxu0 0.0
        %1020 = vmatpush.xpose.msra.mxu0 0.0
        %1021 = vmatpush.xpose.msra.mxu0 0.0
        %1022 = vmatpush.xpose.msra.mxu0 0.0
        %1023 = vmatpush.xpose.msra.mxu0 0.0
        %1024 = vmatpush.xpose.msra.mxu0 0.0
        %1025 = vmatpush.xpose.msra.mxu0 0.0
        %1026 = vmatpush.xpose.msra.mxu0 0.0
        %1027 = vmatpush.xpose.msra.mxu0 0.0
        %1028 = vmatpush.xpose.msra.mxu0 0.0
        %1029 = vmatpush.xpose.msra.mxu0 0.0
        %1030 = vmatpush.xpose.msra.mxu0 0.0
        %1031 = vmatpush.xpose.msra.mxu0 0.0
        %1032 = vmatpush.xpose.msra.mxu0 0.0
        %1033 = vmatpush.xpose.msra.mxu0 %v1016
        %1034 = vmatmul.f32.gmra.mxu0 %v1014
        %v1035 = vpop.f32.mrf.mxu0
        %v1036 = vadd.f32 %v528, %v1035
        %1037 = vdwg.mxu0
        %v1038 = vsel %vm533, %v1036, -inf
        %1039 = vmax.xlane.f32.xlu0 %v1038
        %v1040 = vpop.xlane.xlu0 %1039
        %v1041 = vsub.f32 %v1036, %v1040
        %v1042 = vmul.f32 %v1041, 1.442695
        %v1043 = vpow.pop %v1042
        %v1044 = vsel %vm533, %v1043, 0.0
        %1045 = vadd.xlane.f32.xlu0 %v1044
        %v1046 = vpop.xlane.xlu0 %1045
        %v1047 = vrcp.pop %v1046
        %v1048 = vmul.f32 %v1046, %v1047
        %v1049 = vsub.f32 1.0, %v1048
        %v1050 = vmul.f32 %v1047, %v1049
        %v1051 = vadd.f32 %v1047, %v1050
        %vm1052 = vweird.f32 %v1046
        %vm1053 = vweird.f32 %v1047
        %vm1054 = vmor %vm1052, %vm1053
        %v1055 = vsel %vm1054, %v1047, %v1051
        %v1056 = vand.u32 2147483647, %v1046
        %vm1057 = vcmp.eq.f32.partialorder %v1056, 8.507059e+37
        %v1058 = vand.u32 %v1046, 2147483648
        %v1059 = vor.u32 1.1754944e-38, %v1058
        %v1060 = vsel %vm1057, %v1059, %v1055
        %v1061 = vmul.f32 %v1043, %v1060
        %1062 = vrot.lane.b32.xlu0 %v931, 56
        %v1063 = vpop.permute.xlu0 %1062
        %v1066 = vsel %vm533, %v1061, 0
        %1068 = vmatpush.msra.mxu0 0.0
        %1069 = vmatpush.msra.mxu0 0.0
        %1070 = vmatpush.msra.mxu0 0.0
        %1071 = vmatpush.msra.mxu0 0.0
        %1072 = vmatpush.msra.mxu0 0.0
        %1073 = vmatpush.msra.mxu0 0.0
        %1074 = vmatpush.msra.mxu0 0.0
        %1075 = vmatpush.msra.mxu0 0.0
        %1076 = vmatpush.msra.mxu0 0.0
        %1077 = vmatpush.msra.mxu0 0.0
        %1078 = vmatpush.msra.mxu0 0.0
        %1079 = vmatpush.msra.mxu0 0.0
        %1080 = vmatpush.msra.mxu0 0.0
        %1081 = vmatpush.msra.mxu0 0.0
        %1082 = vmatpush.msra.mxu0 0.0
        %1083 = vmatpush.msra.mxu0 %v1063
        %1084 = vmatmul.f32.gmra.mxu0 %v1066
        %v1085 = vpop.f32.mrf.mxu0
        %v1086 = vadd.f32 0.0, %v1085
        %1087 = vdwg.mxu0
        %1088 = vrot.lane.b32.xlu0 %v931, 112
        %v1089 = vpop.permute.xlu0 %1088
        %1090 = vrot.lane.b32.xlu0 %v931, 80
        %v1091 = vpop.permute.xlu0 %1090
        %v1092 = vsel %vm533, %v1089, 0
        %v1094 = vsel %vm533, %v1091, 0
        %1096 = vmatpush.xpose.msra.mxu0 0.0
        %1097 = vmatpush.xpose.msra.mxu0 0.0
        %1098 = vmatpush.xpose.msra.mxu0 0.0
        %1099 = vmatpush.xpose.msra.mxu0 0.0
        %1100 = vmatpush.xpose.msra.mxu0 0.0
        %1101 = vmatpush.xpose.msra.mxu0 0.0
        %1102 = vmatpush.xpose.msra.mxu0 0.0
        %1103 = vmatpush.xpose.msra.mxu0 0.0
        %1104 = vmatpush.xpose.msra.mxu0 0.0
        %1105 = vmatpush.xpose.msra.mxu0 0.0
        %1106 = vmatpush.xpose.msra.mxu0 0.0
        %1107 = vmatpush.xpose.msra.mxu0 0.0
        %1108 = vmatpush.xpose.msra.mxu0 0.0
        %1109 = vmatpush.xpose.msra.mxu0 0.0
        %1110 = vmatpush.xpose.msra.mxu0 0.0
        %1111 = vmatpush.xpose.msra.mxu0 %v1094
        %1112 = vmatmul.f32.gmra.mxu0 %v1092
        %v1113 = vpop.f32.mrf.mxu0
        %v1114 = vadd.f32 %v528, %v1113
        %1115 = vdwg.mxu0
        %v1116 = vsel %vm533, %v1114, -inf
        %1117 = vmax.xlane.f32.xlu0 %v1116
        %v1118 = vpop.xlane.xlu0 %1117
        %v1119 = vsub.f32 %v1114, %v1118
        %v1120 = vmul.f32 %v1119, 1.442695
        %v1121 = vpow.pop %v1120
        %v1122 = vsel %vm533, %v1121, 0.0
        %1123 = vadd.xlane.f32.xlu0 %v1122
        %v1124 = vpop.xlane.xlu0 %1123
        %v1125 = vrcp.pop %v1124
        %v1126 = vmul.f32 %v1124, %v1125
        %v1127 = vsub.f32 1.0, %v1126
        %v1128 = vmul.f32 %v1125, %v1127
        %v1129 = vadd.f32 %v1125, %v1128
        %vm1130 = vweird.f32 %v1124
        %vm1131 = vweird.f32 %v1125
        %vm1132 = vmor %vm1130, %vm1131
        %v1133 = vsel %vm1132, %v1125, %v1129
        %v1134 = vand.u32 2147483647, %v1124
        %vm1135 = vcmp.eq.f32.partialorder %v1134, 8.507059e+37
        %v1136 = vand.u32 %v1124, 2147483648
        %v1137 = vor.u32 1.1754944e-38, %v1136
        %v1138 = vsel %vm1135, %v1137, %v1133
        %v1139 = vmul.f32 %v1121, %v1138
        %1140 = vrot.lane.b32.xlu0 %v931, 48
        %v1141 = vpop.permute.xlu0 %1140
        %v1144 = vsel %vm533, %v1139, 0
        %1146 = vmatpush.msra.mxu0 0.0
        %1147 = vmatpush.msra.mxu0 0.0
        %1148 = vmatpush.msra.mxu0 0.0
        %1149 = vmatpush.msra.mxu0 0.0
        %1150 = vmatpush.msra.mxu0 0.0
        %1151 = vmatpush.msra.mxu0 0.0
        %1152 = vmatpush.msra.mxu0 0.0
        %1153 = vmatpush.msra.mxu0 0.0
        %1154 = vmatpush.msra.mxu0 0.0
        %1155 = vmatpush.msra.mxu0 0.0
        %1156 = vmatpush.msra.mxu0 0.0
        %1157 = vmatpush.msra.mxu0 0.0
        %1158 = vmatpush.msra.mxu0 0.0
        %1159 = vmatpush.msra.mxu0 0.0
        %1160 = vmatpush.msra.mxu0 0.0
        %1161 = vmatpush.msra.mxu0 %v1141
        %1162 = vmatmul.f32.gmra.mxu0 %v1144
        %v1163 = vpop.f32.mrf.mxu0
        %v1164 = vadd.f32 0.0, %v1163
        %1165 = vdwg.mxu0
        %1166 = vrot.lane.b32.xlu0 %v931, 104
        %v1167 = vpop.permute.xlu0 %1166
        %1168 = vrot.lane.b32.xlu0 %v931, 72
        %v1169 = vpop.permute.xlu0 %1168
        %v1170 = vsel %vm533, %v1167, 0
        %v1172 = vsel %vm533, %v1169, 0
        %1174 = vmatpush.xpose.msra.mxu0 0.0
        %1175 = vmatpush.xpose.msra.mxu0 0.0
        %1176 = vmatpush.xpose.msra.mxu0 0.0
        %1177 = vmatpush.xpose.msra.mxu0 0.0
        %1178 = vmatpush.xpose.msra.mxu0 0.0
        %1179 = vmatpush.xpose.msra.mxu0 0.0
        %1180 = vmatpush.xpose.msra.mxu0 0.0
        %1181 = vmatpush.xpose.msra.mxu0 0.0
        %1182 = vmatpush.xpose.msra.mxu0 0.0
        %1183 = vmatpush.xpose.msra.mxu0 0.0
        %1184 = vmatpush.xpose.msra.mxu0 0.0
        %1185 = vmatpush.xpose.msra.mxu0 0.0
        %1186 = vmatpush.xpose.msra.mxu0 0.0
        %1187 = vmatpush.xpose.msra.mxu0 0.0
        %1188 = vmatpush.xpose.msra.mxu0 0.0
        %1189 = vmatpush.xpose.msra.mxu0 %v1172
        %1190 = vmatmul.f32.gmra.mxu0 %v1170
        %v1191 = vpop.f32.mrf.mxu0
        %v1192 = vadd.f32 %v528, %v1191
        %1193 = vdwg.mxu0
        %v1194 = vsel %vm533, %v1192, -inf
        %1195 = vmax.xlane.f32.xlu0 %v1194
        %v1196 = vpop.xlane.xlu0 %1195
        %v1197 = vsub.f32 %v1192, %v1196
        %v1198 = vmul.f32 %v1197, 1.442695
        %v1199 = vpow.pop %v1198
        %v1200 = vsel %vm533, %v1199, 0.0
        %1201 = vadd.xlane.f32.xlu0 %v1200
        %v1202 = vpop.xlane.xlu0 %1201
        %v1203 = vrcp.pop %v1202
        %v1204 = vmul.f32 %v1202, %v1203
        %v1205 = vsub.f32 1.0, %v1204
        %v1206 = vmul.f32 %v1203, %v1205
        %v1207 = vadd.f32 %v1203, %v1206
        %vm1208 = vweird.f32 %v1202
        %vm1209 = vweird.f32 %v1203
        %vm1210 = vmor %vm1208, %vm1209
        %v1211 = vsel %vm1210, %v1203, %v1207
        %v1212 = vand.u32 2147483647, %v1202
        %vm1213 = vcmp.eq.f32.partialorder %v1212, 8.507059e+37
        %v1214 = vand.u32 %v1202, 2147483648
        %v1215 = vor.u32 1.1754944e-38, %v1214
        %v1216 = vsel %vm1213, %v1215, %v1211
        %v1217 = vmul.f32 %v1199, %v1216
        %1218 = vrot.lane.b32.xlu0 %v931, 40
        %v1219 = vpop.permute.xlu0 %1218
        %v1222 = vsel %vm533, %v1217, 0
        %1224 = vmatpush.msra.mxu0 0.0
        %1225 = vmatpush.msra.mxu0 0.0
        %1226 = vmatpush.msra.mxu0 0.0
        %1227 = vmatpush.msra.mxu0 0.0
        %1228 = vmatpush.msra.mxu0 0.0
        %1229 = vmatpush.msra.mxu0 0.0
        %1230 = vmatpush.msra.mxu0 0.0
        %1231 = vmatpush.msra.mxu0 0.0
        %1232 = vmatpush.msra.mxu0 0.0
        %1233 = vmatpush.msra.mxu0 0.0
        %1234 = vmatpush.msra.mxu0 0.0
        %1235 = vmatpush.msra.mxu0 0.0
        %1236 = vmatpush.msra.mxu0 0.0
        %1237 = vmatpush.msra.mxu0 0.0
        %1238 = vmatpush.msra.mxu0 0.0
        %1239 = vmatpush.msra.mxu0 %v1219
        %1240 = vmatmul.f32.gmra.mxu0 %v1222
        %v1241 = vpop.f32.mrf.mxu0
        %v1242 = vadd.f32 0.0, %v1241
        %1243 = vdwg.mxu0
        %1245 = vrot.lane.b32.xlu0 %v1086, 8
        %v1246 = vpop.permute.xlu0 %1245
        %1249 = vrot.lane.b32.xlu0 %v1164, 16
        %v1250 = vpop.permute.xlu0 %1249
        %1253 = vrot.lane.b32.xlu0 %v1242, 24
        %v1254 = vpop.permute.xlu0 %1253
        %v1256 = vsel %vm533, %v1008, %v1246
        %v1257 = vsel %vm855, %v1256, %v1250
        %v1258 = vsel %vm857, %v1257, %v1254
        %v1260 = vsel %vm464, %v1258, 0
        %1262 = vmatpush.msra.mxu0 0.0
        %1263 = vmatpush.msra.mxu0 0.0
        %1264 = vmatpush.msra.mxu0 0.0
        %1265 = vmatpush.msra.mxu0 0.0
        %1266 = vmatpush.msra.mxu0 0.0
        %1267 = vmatpush.msra.mxu0 0.0
        %1268 = vmatpush.msra.mxu0 0.0
        %1269 = vmatpush.msra.mxu0 0.0
        %1270 = vmatpush.msra.mxu0 0.0
        %1271 = vmatpush.msra.mxu0 0.0
        %1272 = vmatpush.msra.mxu0 0.0
        %1273 = vmatpush.msra.mxu0 0.0
        %1274 = vmatpush.msra.mxu0 %v402
        %1275 = vmatpush.msra.mxu0 %v401
        %1276 = vmatpush.msra.mxu0 %v400
        %1277 = vmatpush.msra.mxu0 %v399
        %1278 = vmatmul.f32.gmra.mxu0 %v1260
        %v1279 = vpop.f32.mrf.mxu0
        %v1280 = vadd.f32 %v859, %v1279
        %1281 = vdwg.mxu0
        %v1282 = vadd.f32 %v1280, %v909
        %v1283 = vsel %vm464, %v1282, 0.0
        %1284 = vadd.xlane.f32.xlu0 %v1283
        %v1285 = vpop.xlane.xlu0 %1284
        %v1286 = vmul.f32 %v1285, %v474
        %v1287 = vsub.f32 %v1282, %v1286
        %v1288 = vmul.f32 %v1287, %v1287
        %v1289 = vsel %vm464, %v1288, 0.0
        %1290 = vadd.xlane.f32.xlu0 %v1289
        %v1291 = vpop.xlane.xlu0 %1290
        %v1292 = vmul.f32 %v1291, %v474
        %v1293 = vadd.f32 %v1292, 1e-05
        %v1294 = vrsqrt.pop %v1293
        %v1295 = vmul.f32 %v1294, %v1293
        %v1296 = vmul.f32 %v1295, %v1294
        %v1297 = vmul.f32 0.5, %v1296
        %v1298 = vsub.f32 1.5, %v1297
        %v1299 = vmul.f32 %v1294, %v1298
        %vm1300 = vweird.f32 %v1293
        %vm1301 = vweird.f32 %v1294
        %vm1302 = vmor %vm1300, %vm1301
        %v1303 = vsel %vm1302, %v1294, %v1299
        %v1304 = vmul.f32 %v1287, %v1303
        %v1305 = vmul.f32 %v1304, %v906
        %v1306 = vadd.f32 %v1305, %v908
        %v1307 = vsel %vm464, %v1306, 0.0
        %v1308 = vrot.slane %v1307, 4
        %v1309 = vadd.f32 %v1307, %v1308
        %v1310 = vrot.slane %v1309, 2
        %v1311 = vadd.f32 %v1309, %v1310
        %v1312 = vrot.slane %v1311, 1
        %v1313 = vadd.f32 %v1311, %v1312
        %v1314 = vmul.f32 %v1313, 0.125
        %vm1315 = vcmask 253952
        %1316 = vst.msk [vmem:[%s372] sm:$0x1] %vm1315, %v1314
        %s1317 = sand.u32 %s234, 1
        %s1318 = scalar_lea.sflag [#allocation4], %s1317
        %s1319 = sand.u32 %s234, 1
        %s1320 = scalar_lea.vmem [#allocation7], %s1319
        // Predicated region
        $region65: #{tpu_custom_call.1} parent=55 // pred_check
          %p1321 = pneg %p244
        $region66: #{tpu_custom_call.1} parent=55 // pred_check_branch
          %1323 = sbr.rel (%p1321) target = $region68
        $region67: #{tpu_custom_call.1} parent=55 // pred_region
          %1325 = vsyncadd %s1318, 0
          %s1326 = scalar_lea.hbm %s9, %s27
          %s1328 = sshll.u32 %s1320, 4
          %s1329 = int_to_ptr.vmem [resolvable:$true] %s1328
          %s1330 = sshll.u32 %s1326, 4
          %s1331 = int_to_ptr.hbm [resolvable:$true] %s1330
          %1333 = dma.vmem_to_hbm [thread:$0]  %s1329, 16, %s1331, %s1318
        $region68: #{tpu_custom_call.1} parent=55 // pred_fallthru
          _
      $region56: #{tpu_custom_call.1} parent=5 // pred_fallthru
        _
      %p1334 = scmp.le.s32.totalorder 2, %s22
      // Predicated region
      $region69: #{tpu_custom_call.1} parent=5 // pred_check
        %p1335 = pneg %p1334
      $region70: #{tpu_custom_call.1} parent=5 // pred_check_branch
        %1337 = sbr.rel (%p1335) target = $region72
      $region71: #{tpu_custom_call.1} parent=5 // pred_region
        %s1338 = ssub.s32 %s22, 2
        // Predicated region
        $region73: #{tpu_custom_call.1} parent=71 // pred_check
          %p1339 = pneg %p250
        $region74: #{tpu_custom_call.1} parent=71 // pred_check_branch
          %1341 = sbr.rel (%p1339) target = $region76
        $region75: #{tpu_custom_call.1} parent=71 // pred_region
          %s1342 = sand.u32 %s235, 1
          %s1343 = scalar_lea.sflag [#allocation4], %s1342
          %s1344 = sand.u32 %s235, 1
          %s1345 = scalar_lea.vmem [#allocation7], %s1344
          %1347 = dma.done %s1343, 16
        $region76: #{tpu_custom_call.1} parent=71 // pred_fallthru
          _
      $region72: #{tpu_custom_call.1} parent=5 // pred_fallthru
        _
    $region6: #{tpu_custom_call.1} parent=1 // loop_footer
      %s26 = sadd.s32 1, %s22
    $region7: #{tpu_custom_call.1} parent=1 // loop_footer_branch
      %21 = sbr.rel target = $region3
    $region8: #{tpu_custom_call.1} parent=1 // loop_exit
      _
    %1348 = vsyncpa [#allocation3], 1
    %s1349 = scalar_lea.sflag [#allocation3], 1
    %1350 = vsyncpa %s1349, 1
    %1351 = vsyncpa [#allocation6], 1
    %1352 = vsyncpa [#allocation4], 1
    %s1353 = scalar_lea.sflag [#allocation4], 1
    %1354 = vsyncpa %s1353, 1

</llo_original>
